<compile_context>
chip_gen: v5e
topology: v5e:2x2
jax: 0.10.0
libtpu: 0.0.40
codegen_flags: <defaults>
</compile_context>

<pallas_src>
import functools

import numpy as np
import jax
import jax.numpy as jnp
from jax import lax
from jax.experimental import pallas as pl
from jax.experimental.pallas import tpu as pltpu


# ----------------------------------------------------------------------------
# Wrapper-side prep: pooled-parity im2col in transposed (K, M) orientation.
#
#   xim[b, 2*rv+cp, (kh*3+kw)*Cin+ci, po*W2+qo] = x_pad[b, ci, 2*po+rv+kh, 2*qo+cp+kw]
#
# so the conv result at (2*po+rv, 2*qo+cp) for all channels/pixels of one parity
# is a single (Cout, K) @ (K, M) matmul, and the 2x2 max-pool is an elementwise
# max over the four parity planes.  This is cheap XLA gather glue (strided
# slices + concat) and keeps all Pallas-side arrays lane-dense.
# ----------------------------------------------------------------------------
def pooled_im2col_T(x_nchw_pad, H2, W2):
    B, C = x_nchw_pad.shape[:2]
    M = H2 * W2
    planes = []
    for rv in range(2):
        for cp in range(2):
            taps = []
            for kh in range(3):
                for kw in range(3):
                    r0, c0 = rv + kh, cp + kw
                    piece = x_nchw_pad[:, :, r0:r0 + 2 * H2 - 1:2, c0:c0 + 2 * W2 - 1:2]
                    taps.append(piece.reshape(B, C, M))
            planes.append(jnp.concatenate(taps, axis=1))        # (B, 9*C, M)
    return jnp.stack(planes, axis=1)                            # (B, 4, 9*C, M)


# ----------------------------------------------------------------------------
# Kernel 1: fused 3x3 "same" conv + bias + ReLU + 2x2/2 max-pool.
#   xim_ref : (1, 4, K, M) bf16   (K = 9*Cin, M = pooled pixels, lane-dense)
#   w_ref   : (Cout, K)    bf16
#   b_ref   : (Cout, 1)    f32
#   o_ref   : (1, Cout, M) bf16
# ----------------------------------------------------------------------------
def _conv_relu_pool_kernel(xim_ref, w_ref, b_ref, o_ref, *, n_cols):
    M = xim_ref.shape[3]
    n_chunks = M // n_cols

    def body(c, carry):
        col0 = pl.multiple_of(c * n_cols, n_cols)
        w = w_ref[...]                                           # (Cout, K) bf16
        pooled = None
        for p in range(4):                                       # the four pooling parities
            slab = xim_ref[0, p, :, pl.ds(col0, n_cols)]         # (K, n_cols) bf16
            yp = jnp.dot(w, slab, preferred_element_type=jnp.float32)
            pooled = yp if pooled is None else jnp.maximum(pooled, yp)
        # bias + ReLU commute with the max, so they are applied once, after pooling.
        out = jnp.maximum(pooled + b_ref[...], 0.0)              # (Cout, n_cols) f32
        o_ref[0, :, pl.ds(col0, n_cols)] = out.astype(o_ref.dtype)
        return carry

    lax.fori_loop(0, n_chunks, body, 0)


def conv_relu_pool(xim, w_kc, bias, *, n_cols, vmem_mb):
    B, _, K, M = xim.shape
    Cout = w_kc.shape[0]
    assert M % n_cols == 0 and n_cols % 128 == 0
    kernel = functools.partial(_conv_relu_pool_kernel, n_cols=n_cols)
    return pl.pallas_call(
        kernel,
        out_shape=jax.ShapeDtypeStruct((B, Cout, M), jnp.bfloat16),
        grid=(B,),
        in_specs=[
            pl.BlockSpec((1, 4, K, M), lambda b: (b, 0, 0, 0)),
            pl.BlockSpec((Cout, K), lambda b: (0, 0)),
            pl.BlockSpec((Cout, 1), lambda b: (0, 0)),
        ],
        out_specs=pl.BlockSpec((1, Cout, M), lambda b: (b, 0, 0)),
        compiler_params=pltpu.CompilerParams(
            dimension_semantics=("parallel",),
            vmem_limit_bytes=vmem_mb * 1024 * 1024),
    )(xim, w_kc, bias)


# ----------------------------------------------------------------------------
# Kernel 2: conv2 + bias + ReLU + pool with the Linear head fused into the
# epilogue.  Each chunk's (Cout, n_cols) activation is contracted against the
# matching slice of the (3, Cout, M) Linear weight (VPU multiply + sublane
# reduce) and accumulated in f32; the feature map never leaves VMEM.
#   wl_ref : (3, Cout, M) f32,  bl_ref : (3, 1) f32,  o_ref : (1, 3, 1) f32
# ----------------------------------------------------------------------------
def _conv_relu_pool_linear_kernel(xim_ref, w_ref, b_ref, wl_ref, bl_ref, o_ref, *, n_cols):
    M = xim_ref.shape[3]
    N = wl_ref.shape[0]
    n_chunks = M // n_cols

    def body(c, acc):
        col0 = pl.multiple_of(c * n_cols, n_cols)
        w = w_ref[...]
        pooled = None
        for p in range(4):
            slab = xim_ref[0, p, :, pl.ds(col0, n_cols)]         # (K, n_cols) bf16
            yp = jnp.dot(w, slab, preferred_element_type=jnp.float32)
            pooled = yp if pooled is None else jnp.maximum(pooled, yp)
        act = jnp.maximum(pooled + b_ref[...], 0.0)              # (Cout, n_cols) f32
        rows = []
        for n in range(N):                                       # N = 3 output classes
            wn = wl_ref[n, :, pl.ds(col0, n_cols)]               # (Cout, n_cols) f32
            rows.append(jnp.sum(act * wn, axis=0, keepdims=True))
        return acc + jnp.concatenate(rows, axis=0)               # (N, n_cols) f32

    acc = lax.fori_loop(0, n_chunks, body, jnp.zeros((N, n_cols), jnp.float32))
    o_ref[0] = jnp.sum(acc, axis=1, keepdims=True) + bl_ref[...]  # (N, 1)


def conv_relu_pool_linear(xim, w_kc, bias, w_lin, b_lin, *, n_cols, vmem_mb):
    B, _, K, M = xim.shape
    Cout = w_kc.shape[0]
    N = w_lin.shape[0]
    assert M % n_cols == 0 and n_cols % 128 == 0 and w_lin.shape == (N, Cout, M)
    kernel = functools.partial(_conv_relu_pool_linear_kernel, n_cols=n_cols)
    return pl.pallas_call(
        kernel,
        out_shape=jax.ShapeDtypeStruct((B, N, 1), jnp.float32),
        grid=(B,),
        in_specs=[
            pl.BlockSpec((1, 4, K, M), lambda b: (b, 0, 0, 0)),
            pl.BlockSpec((Cout, K), lambda b: (0, 0)),
            pl.BlockSpec((Cout, 1), lambda b: (0, 0)),
            pl.BlockSpec((N, Cout, M), lambda b: (0, 0, 0)),
            pl.BlockSpec((N, 1), lambda b: (0, 0)),
        ],
        out_specs=pl.BlockSpec((1, N, 1), lambda b: (b, 0, 0)),
        compiler_params=pltpu.CompilerParams(
            dimension_semantics=("parallel",),
            vmem_limit_bytes=vmem_mb * 1024 * 1024),
    )(xim, w_kc, bias, w_lin, b_lin)


# ----------------------------------------------------------------------------
# Parameter prep (once, outside the hot path) + full forward pass
# ----------------------------------------------------------------------------
def prepare_params(params):
    """Torch-layout params -> Pallas-friendly layouts/dtypes."""
    w1, b1, w2, b2, wo, bo = params

    def conv_w(w):  # (Cout, Cin, 3, 3) -> (Cout, 9*Cin), K ordered (kh, kw, ci)
        Cout, Cin = w.shape[0], w.shape[1]
        return jnp.transpose(w, (0, 2, 3, 1)).reshape(Cout, 9 * Cin).astype(jnp.bfloat16)

    w1p = conv_w(w1)
    w2p = conv_w(w2)
    b1p = b1.reshape(-1, 1).astype(jnp.float32)
    b2p = b2.reshape(-1, 1).astype(jnp.float32)
    # torch's x.view(B, -1) flattens (C, H, W); conv2's kernel streams pixels m = h*W + w per
    # channel, so the Linear weight is simply reshaped to (3, 64, 1024) -- no permutation.
    wo_p = wo.reshape(3, 64, 32 * 32).astype(jnp.float32)
    bo_p = bo.reshape(3, 1).astype(jnp.float32)
    return w1p, b1p, w2p, b2p, wo_p, bo_p


def cnn_forward(x_nchw, prepared):
    w1p, b1p, w2p, b2p, wo_p, bo_p = prepared
    B = x_nchw.shape[0]
    x = x_nchw.astype(jnp.bfloat16)

    # conv1: 3 -> 32, 128x128 -> pooled 64x64
    x_pad = jnp.pad(x, ((0, 0), (0, 0), (1, 1), (1, 1)))
    xim1 = pooled_im2col_T(x_pad, 64, 64)                            # (B, 4, 27, 4096) bf16
    y1 = conv_relu_pool(xim1, w1p, b1p, n_cols=512, vmem_mb=12)      # (B, 32, 4096) bf16

    # conv2: 32 -> 64, 64x64 -> pooled 32x32, with the Linear head fused in.
    y1_img = y1.reshape(B, 32, 64, 64)
    y1_pad = jnp.pad(y1_img, ((0, 0), (0, 0), (1, 1), (1, 1)))
    xim2 = pooled_im2col_T(y1_pad, 32, 32)                           # (B, 4, 288, 1024) bf16
    logits = conv_relu_pool_linear(xim2, w2p, b2p, wo_p, bo_p,
                                   n_cols=128, vmem_mb=16)           # (B, 3, 1) f32
    return logits.reshape(B, 3)


# ----------------------------------------------------------------------------
# Pure-JAX f32 reference for the correctness self-check
# ----------------------------------------------------------------------------
def reference_forward(x_nchw, params):
    w1, b1, w2, b2, wo, bo = params

    def conv_relu(x, w, b):
        y = lax.conv_general_dilated(
            x, w, (1, 1), "SAME",
            dimension_numbers=("NCHW", "OIHW", "NCHW"),
            precision=lax.Precision.HIGHEST)
        return jax.nn.relu(y + b[None, :, None, None])

    def pool(x):
        return lax.reduce_window(x, -jnp.inf, lax.max,
                                 (1, 1, 2, 2), (1, 1, 2, 2), "VALID")

    y = pool(conv_relu(x_nchw, w1, b1))
    y = pool(conv_relu(y, w2, b2))
    feat = y.reshape(x_nchw.shape[0], -1)                            # NCHW flatten (torch order)
    return jnp.dot(feat, wo.T, precision=lax.Precision.HIGHEST) + bo


if __name__ == "__main__":
    key = jax.random.PRNGKey(0)
    kx, k1, k2, k3, k4, k5, k6 = jax.random.split(key, 7)

    # Synthetic parameters in torch layouts: conv weights (Cout, Cin, kh, kw),
    # Linear weight (out_features, in_features) in NCHW-flatten order.
    w1 = jax.random.normal(k1, (32, 3, 3, 3), jnp.float32) / np.sqrt(3 * 3 * 3)
    b1 = jax.random.normal(k2, (32,), jnp.float32) * 0.01
    w2 = jax.random.normal(k3, (64, 32, 3, 3), jnp.float32) / np.sqrt(3 * 3 * 32)
    b2 = jax.random.normal(k4, (64,), jnp.float32) * 0.01
    wo = jax.random.normal(k5, (3, 64 * 32 * 32), jnp.float32) / np.sqrt(64 * 32 * 32)
    bo = jax.random.normal(k6, (3,), jnp.float32) * 0.01
    params = (w1, b1, w2, b2, wo, bo)
    prepared = prepare_params(params)

    # PyTorch NCHW input; spatial 128x128 is implied by Linear(64*32*32, 3).
    x = jax.random.normal(kx, (2, 3, 128, 128), jnp.float32)

    out = jax.block_until_ready(jax.jit(cnn_forward)(x, prepared))
    assert out.shape == (2, 3) and out.dtype == jnp.float32

    ref = jax.block_until_ready(reference_forward(x, params))
    # bf16 activations/weights on the Pallas conv path -> compare with a bf16 tolerance.
    if not np.allclose(np.asarray(out), np.asarray(ref), rtol=5e-2, atol=5e-2):
        raise AssertionError(f"Pallas CNN mismatch:\n{out}\nvs ref\n{ref}")

    print("KERNEL_OK")
</pallas_src>

<mosaic_0001>
module attributes {stable_mosaic.version = 11 : i64} {
  func.func @_conv_relu_pool_kernel(%arg0: i32, %arg1: memref<1x4x27x4096xbf16, #tpu.memory_space<vmem>>, %arg2: memref<32x27xbf16, #tpu.memory_space<vmem>>, %arg3: memref<32x1xf32, #tpu.memory_space<vmem>>, %arg4: memref<1x32x4096xbf16, #tpu.memory_space<vmem>>) attributes {dimension_semantics = [#tpu.dimension_semantics<parallel>], iteration_bounds = array<i64: 2>, scalar_prefetch = 0 : i64, scratch_operands = 0 : i64, tpu.core_type = #tpu.core_type<tc>, window_params = [{transform_indices = @transform_0, window_bounds = array<i64: 1, 4, 27, 4096>}, {pipeline_mode = #tpu.pipeline_mode<synchronous>, transform_indices = @transform_1, window_bounds = array<i64: 32, 27>}, {pipeline_mode = #tpu.pipeline_mode<synchronous>, transform_indices = @transform_2, window_bounds = array<i64: 32, 1>}, {transform_indices = @transform_3, window_bounds = array<i64: 1, 32, 4096>}]} {
    %c0_i32 = arith.constant 0 : i32
    %c8_i32 = arith.constant 8 : i32
    %0 = arith.addi %c0_i32, %c8_i32 : i32
    %c1_i32 = arith.constant 1 : i32
    scf.for %arg5 = %c0_i32 to %0 step %c1_i32  : i32 {
      %c512_i32 = arith.constant 512 : i32
      %1 = arith.muli %arg5, %c512_i32 : i32
      %2 = tpu.assume_multiple %1, 512 : i32
      %c0 = arith.constant 0 : index
      %c0_1 = arith.constant 0 : index
      %3 = vector.load %arg2[%c0, %c0_1] : memref<32x27xbf16, #tpu.memory_space<vmem>>, vector<32x27xbf16>
      %c0_2 = arith.constant 0 : index
      %c0_3 = arith.constant 0 : index
      %c0_4 = arith.constant 0 : index
      %4 = arith.index_cast %2 : i32 to index
      %5 = vector.load %arg1[%c0_2, %c0_3, %c0_4, %4] : memref<1x4x27x4096xbf16, #tpu.memory_space<vmem>>, vector<1x1x27x512xbf16>
      %6 = vector.shape_cast %5 : vector<1x1x27x512xbf16> to vector<27x512xbf16>
      %cst = arith.constant dense<0.000000e+00> : vector<32x512xf32>
      %7 = tpu.matmul %3, %6, %cst {dimension_numbers = #tpu.dot_dimension_numbers<[1], [0], [0], [1], [0, 0, 1, 1], [], []>} : vector<32x27xbf16>, vector<27x512xbf16>, vector<32x512xf32> -> vector<32x512xf32>
      %c0_5 = arith.constant 0 : index
      %c1 = arith.constant 1 : index
      %c0_6 = arith.constant 0 : index
      %8 = arith.index_cast %2 : i32 to index
      %9 = vector.load %arg1[%c0_5, %c1, %c0_6, %8] : memref<1x4x27x4096xbf16, #tpu.memory_space<vmem>>, vector<1x1x27x512xbf16>
      %10 = vector.shape_cast %9 : vector<1x1x27x512xbf16> to vector<27x512xbf16>
      %cst_7 = arith.constant dense<0.000000e+00> : vector<32x512xf32>
      %11 = tpu.matmul %3, %10, %cst_7 {dimension_numbers = #tpu.dot_dimension_numbers<[1], [0], [0], [1], [0, 0, 1, 1], [], []>} : vector<32x27xbf16>, vector<27x512xbf16>, vector<32x512xf32> -> vector<32x512xf32>
      %12 = arith.maximumf %7, %11 : vector<32x512xf32>
      %c0_8 = arith.constant 0 : index
      %c2 = arith.constant 2 : index
      %c0_9 = arith.constant 0 : index
      %13 = arith.index_cast %2 : i32 to index
      %14 = vector.load %arg1[%c0_8, %c2, %c0_9, %13] : memref<1x4x27x4096xbf16, #tpu.memory_space<vmem>>, vector<1x1x27x512xbf16>
      %15 = vector.shape_cast %14 : vector<1x1x27x512xbf16> to vector<27x512xbf16>
      %cst_10 = arith.constant dense<0.000000e+00> : vector<32x512xf32>
      %16 = tpu.matmul %3, %15, %cst_10 {dimension_numbers = #tpu.dot_dimension_numbers<[1], [0], [0], [1], [0, 0, 1, 1], [], []>} : vector<32x27xbf16>, vector<27x512xbf16>, vector<32x512xf32> -> vector<32x512xf32>
      %17 = arith.maximumf %12, %16 : vector<32x512xf32>
      %c0_11 = arith.constant 0 : index
      %c3 = arith.constant 3 : index
      %c0_12 = arith.constant 0 : index
      %18 = arith.index_cast %2 : i32 to index
      %19 = vector.load %arg1[%c0_11, %c3, %c0_12, %18] : memref<1x4x27x4096xbf16, #tpu.memory_space<vmem>>, vector<1x1x27x512xbf16>
      %20 = vector.shape_cast %19 : vector<1x1x27x512xbf16> to vector<27x512xbf16>
      %cst_13 = arith.constant dense<0.000000e+00> : vector<32x512xf32>
      %21 = tpu.matmul %3, %20, %cst_13 {dimension_numbers = #tpu.dot_dimension_numbers<[1], [0], [0], [1], [0, 0, 1, 1], [], []>} : vector<32x27xbf16>, vector<27x512xbf16>, vector<32x512xf32> -> vector<32x512xf32>
      %22 = arith.maximumf %17, %21 : vector<32x512xf32>
      %c0_14 = arith.constant 0 : index
      %c0_15 = arith.constant 0 : index
      %23 = vector.load %arg3[%c0_14, %c0_15] : memref<32x1xf32, #tpu.memory_space<vmem>>, vector<32x1xf32>
      %24 = vector.broadcast %23 : vector<32x1xf32> to vector<32x512xf32>
      %25 = arith.addf %22, %24 : vector<32x512xf32>
      %cst_16 = arith.constant 0.000000e+00 : f32
      %26 = vector.broadcast %cst_16 : f32 to vector<32x512xf32>
      %27 = arith.maximumf %25, %26 : vector<32x512xf32>
      %28 = arith.truncf %27 : vector<32x512xf32> to vector<32x512xbf16>
      %c0_17 = arith.constant 0 : index
      %c0_18 = arith.constant 0 : index
      %29 = arith.index_cast %2 : i32 to index
      %30 = vector.load %arg4[%c0_17, %c0_18, %29] : memref<1x32x4096xbf16, #tpu.memory_space<vmem>>, vector<1x32x512xbf16>
      %31 = vector.shape_cast %30 : vector<1x32x512xbf16> to vector<32x512xbf16>
      %32 = vector.shape_cast %28 : vector<32x512xbf16> to vector<1x32x512xbf16>
      tpu.vector_store %arg4[%c0_17, %c0_18, %29], %32 {strides = array<i32>} : memref<1x32x4096xbf16, #tpu.memory_space<vmem>>, vector<1x32x512xbf16>,
    }
    %c8_i32_0 = arith.constant 8 : i32
    return
  }
  func.func @transform_0(%arg0: i32) -> (i32, i32, i32, i32) {
    %c0_i32 = arith.constant 0 : i32
    %c0_i32_0 = arith.constant 0 : i32
    %c0_i32_1 = arith.constant 0 : i32
    %c0_i32_2 = arith.constant 0 : i32
    return %arg0, %c0_i32, %c0_i32_0, %c0_i32_1 : i32, i32, i32, i32
  }
  func.func @transform_1(%arg0: i32) -> (i32, i32) {
    %c0_i32 = arith.constant 0 : i32
    %c0_i32_0 = arith.constant 0 : i32
    %c0_i32_1 = arith.constant 0 : i32
    return %c0_i32, %c0_i32_0 : i32, i32
  }
  func.func @transform_2(%arg0: i32) -> (i32, i32) {
    %c0_i32 = arith.constant 0 : i32
    %c0_i32_0 = arith.constant 0 : i32
    %c0_i32_1 = arith.constant 0 : i32
    return %c0_i32, %c0_i32_0 : i32, i32
  }
  func.func @transform_3(%arg0: i32) -> (i32, i32, i32) {
    %c0_i32 = arith.constant 0 : i32
    %c0_i32_0 = arith.constant 0 : i32
    %c0_i32_1 = arith.constant 0 : i32
    return %arg0, %c0_i32, %c0_i32_0 : i32, i32, i32
  }
}

module attributes {stable_mosaic.version = 11 : i64} {
  func.func @_conv_relu_pool_linear_kernel(%arg0: i32, %arg1: memref<1x4x288x1024xbf16, #tpu.memory_space<vmem>>, %arg2: memref<64x288xbf16, #tpu.memory_space<vmem>>, %arg3: memref<64x1xf32, #tpu.memory_space<vmem>>, %arg4: memref<3x64x1024xf32, #tpu.memory_space<vmem>>, %arg5: memref<3x1xf32, #tpu.memory_space<vmem>>, %arg6: memref<1x3x1xf32, #tpu.memory_space<vmem>>) attributes {dimension_semantics = [#tpu.dimension_semantics<parallel>], iteration_bounds = array<i64: 2>, scalar_prefetch = 0 : i64, scratch_operands = 0 : i64, tpu.core_type = #tpu.core_type<tc>, window_params = [{transform_indices = @transform_0, window_bounds = array<i64: 1, 4, 288, 1024>}, {pipeline_mode = #tpu.pipeline_mode<synchronous>, transform_indices = @transform_1, window_bounds = array<i64: 64, 288>}, {pipeline_mode = #tpu.pipeline_mode<synchronous>, transform_indices = @transform_2, window_bounds = array<i64: 64, 1>}, {pipeline_mode = #tpu.pipeline_mode<synchronous>, transform_indices = @transform_3, window_bounds = array<i64: 3, 64, 1024>}, {pipeline_mode = #tpu.pipeline_mode<synchronous>, transform_indices = @transform_4, window_bounds = array<i64: 3, 1>}, {transform_indices = @transform_5, window_bounds = array<i64: 1, 3, 1>}]} {
    %cst = arith.constant 0.000000e+00 : f32
    %0 = vector.broadcast %cst : f32 to vector<3x128xf32>
    %c0_i32 = arith.constant 0 : i32
    %c8_i32 = arith.constant 8 : i32
    %1 = arith.addi %c0_i32, %c8_i32 : i32
    %c1_i32 = arith.constant 1 : i32
    %2 = scf.for %arg7 = %c0_i32 to %1 step %c1_i32 iter_args(%arg8 = %0) -> (vector<3x128xf32>)  : i32 {
      %c128_i32 = arith.constant 128 : i32
      %10 = arith.muli %arg7, %c128_i32 : i32
      %11 = tpu.assume_multiple %10, 128 : i32
      %c0_6 = arith.constant 0 : index
      %c0_7 = arith.constant 0 : index
      %12 = vector.load %arg2[%c0_6, %c0_7] : memref<64x288xbf16, #tpu.memory_space<vmem>>, vector<64x288xbf16>
      %c0_8 = arith.constant 0 : index
      %c0_9 = arith.constant 0 : index
      %c0_10 = arith.constant 0 : index
      %13 = arith.index_cast %11 : i32 to index
      %14 = vector.load %arg1[%c0_8, %c0_9, %c0_10, %13] : memref<1x4x288x1024xbf16, #tpu.memory_space<vmem>>, vector<1x1x288x128xbf16>
      %15 = vector.shape_cast %14 : vector<1x1x288x128xbf16> to vector<288x128xbf16>
      %cst_11 = arith.constant dense<0.000000e+00> : vector<64x128xf32>
      %16 = tpu.matmul %12, %15, %cst_11 {dimension_numbers = #tpu.dot_dimension_numbers<[1], [0], [0], [1], [0, 0, 1, 1], [], []>} : vector<64x288xbf16>, vector<288x128xbf16>, vector<64x128xf32> -> vector<64x128xf32>
      %c0_12 = arith.constant 0 : index
      %c1 = arith.constant 1 : index
      %c0_13 = arith.constant 0 : index
      %17 = arith.index_cast %11 : i32 to index
      %18 = vector.load %arg1[%c0_12, %c1, %c0_13, %17] : memref<1x4x288x1024xbf16, #tpu.memory_space<vmem>>, vector<1x1x288x128xbf16>
      %19 = vector.shape_cast %18 : vector<1x1x288x128xbf16> to vector<288x128xbf16>
      %cst_14 = arith.constant dense<0.000000e+00> : vector<64x128xf32>
      %20 = tpu.matmul %12, %19, %cst_14 {dimension_numbers = #tpu.dot_dimension_numbers<[1], [0], [0], [1], [0, 0, 1, 1], [], []>} : vector<64x288xbf16>, vector<288x128xbf16>, vector<64x128xf32> -> vector<64x128xf32>
      %21 = arith.maximumf %16, %20 : vector<64x128xf32>
      %c0_15 = arith.constant 0 : index
      %c2 = arith.constant 2 : index
      %c0_16 = arith.constant 0 : index
      %22 = arith.index_cast %11 : i32 to index
      %23 = vector.load %arg1[%c0_15, %c2, %c0_16, %22] : memref<1x4x288x1024xbf16, #tpu.memory_space<vmem>>, vector<1x1x288x128xbf16>
      %24 = vector.shape_cast %23 : vector<1x1x288x128xbf16> to vector<288x128xbf16>
      %cst_17 = arith.constant dense<0.000000e+00> : vector<64x128xf32>
      %25 = tpu.matmul %12, %24, %cst_17 {dimension_numbers = #tpu.dot_dimension_numbers<[1], [0], [0], [1], [0, 0, 1, 1], [], []>} : vector<64x288xbf16>, vector<288x128xbf16>, vector<64x128xf32> -> vector<64x128xf32>
      %26 = arith.maximumf %21, %25 : vector<64x128xf32>
      %c0_18 = arith.constant 0 : index
      %c3 = arith.constant 3 : index
      %c0_19 = arith.constant 0 : index
      %27 = arith.index_cast %11 : i32 to index
      %28 = vector.load %arg1[%c0_18, %c3, %c0_19, %27] : memref<1x4x288x1024xbf16, #tpu.memory_space<vmem>>, vector<1x1x288x128xbf16>
      %29 = vector.shape_cast %28 : vector<1x1x288x128xbf16> to vector<288x128xbf16>
      %cst_20 = arith.constant dense<0.000000e+00> : vector<64x128xf32>
      %30 = tpu.matmul %12, %29, %cst_20 {dimension_numbers = #tpu.dot_dimension_numbers<[1], [0], [0], [1], [0, 0, 1, 1], [], []>} : vector<64x288xbf16>, vector<288x128xbf16>, vector<64x128xf32> -> vector<64x128xf32>
      %31 = arith.maximumf %26, %30 : vector<64x128xf32>
      %c0_21 = arith.constant 0 : index
      %c0_22 = arith.constant 0 : index
      %32 = vector.load %arg3[%c0_21, %c0_22] : memref<64x1xf32, #tpu.memory_space<vmem>>, vector<64x1xf32>
      %33 = vector.broadcast %32 : vector<64x1xf32> to vector<64x128xf32>
      %34 = arith.addf %31, %33 : vector<64x128xf32>
      %cst_23 = arith.constant 0.000000e+00 : f32
      %35 = vector.broadcast %cst_23 : f32 to vector<64x128xf32>
      %36 = arith.maximumf %34, %35 : vector<64x128xf32>
      %c0_24 = arith.constant 0 : index
      %c0_25 = arith.constant 0 : index
      %37 = arith.index_cast %11 : i32 to index
      %38 = vector.load %arg4[%c0_24, %c0_25, %37] : memref<3x64x1024xf32, #tpu.memory_space<vmem>>, vector<1x64x128xf32>
      %39 = vector.shape_cast %38 : vector<1x64x128xf32> to vector<64x128xf32>
      %40 = arith.mulf %36, %39 : vector<64x128xf32>
      %cst_26 = arith.constant dense<0.000000e+00> : vector<128xf32>
      %41 = vector.multi_reduction <add>, %40, %cst_26 [0] : vector<64x128xf32> to vector<128xf32>
      %42 = vector.shape_cast %41 : vector<128xf32> to vector<1x128xf32>
      %c1_27 = arith.constant 1 : index
      %c0_28 = arith.constant 0 : index
      %43 = arith.index_cast %11 : i32 to index
      %44 = vector.load %arg4[%c1_27, %c0_28, %43] : memref<3x64x1024xf32, #tpu.memory_space<vmem>>, vector<1x64x128xf32>
      %45 = vector.shape_cast %44 : vector<1x64x128xf32> to vector<64x128xf32>
      %46 = arith.mulf %36, %45 : vector<64x128xf32>
      %cst_29 = arith.constant dense<0.000000e+00> : vector<128xf32>
      %47 = vector.multi_reduction <add>, %46, %cst_29 [0] : vector<64x128xf32> to vector<128xf32>
      %48 = vector.shape_cast %47 : vector<128xf32> to vector<1x128xf32>
      %c2_30 = arith.constant 2 : index
      %c0_31 = arith.constant 0 : index
      %49 = arith.index_cast %11 : i32 to index
      %50 = vector.load %arg4[%c2_30, %c0_31, %49] : memref<3x64x1024xf32, #tpu.memory_space<vmem>>, vector<1x64x128xf32>
      %51 = vector.shape_cast %50 : vector<1x64x128xf32> to vector<64x128xf32>
      %52 = arith.mulf %36, %51 : vector<64x128xf32>
      %cst_32 = arith.constant dense<0.000000e+00> : vector<128xf32>
      %53 = vector.multi_reduction <add>, %52, %cst_32 [0] : vector<64x128xf32> to vector<128xf32>
      %54 = vector.shape_cast %53 : vector<128xf32> to vector<1x128xf32>
      %55 = tpu.concatenate %42, %48, %54 in 0 : vector<1x128xf32>, vector<1x128xf32>, vector<1x128xf32> -> vector<3x128xf32>
      %56 = arith.addf %arg8, %55 : vector<3x128xf32>
      scf.yield %56 : vector<3x128xf32>
    }
    %c8_i32_0 = arith.constant 8 : i32
    %cst_1 = arith.constant dense<0.000000e+00> : vector<3xf32>
    %3 = vector.multi_reduction <add>, %2, %cst_1 [1] : vector<3x128xf32> to vector<3xf32>
    %4 = vector.shape_cast %3 : vector<3xf32> to vector<3x1xf32>
    %c0 = arith.constant 0 : index
    %c0_2 = arith.constant 0 : index
    %5 = vector.load %arg5[%c0, %c0_2] : memref<3x1xf32, #tpu.memory_space<vmem>>, vector<3x1xf32>
    %6 = arith.addf %4, %5 : vector<3x1xf32>
    %c0_3 = arith.constant 0 : index
    %c0_4 = arith.constant 0 : index
    %c0_5 = arith.constant 0 : index
    %7 = vector.load %arg6[%c0_3, %c0_4, %c0_5] : memref<1x3x1xf32, #tpu.memory_space<vmem>>, vector<1x3x1xf32>
    %8 = vector.shape_cast %7 : vector<1x3x1xf32> to vector<3x1xf32>
    %9 = vector.shape_cast %6 : vector<3x1xf32> to vector<1x3x1xf32>
    tpu.vector_store %arg6[%c0_3, %c0_4, %c0_5], %9 {strides = array<i32>} : memref<1x3x1xf32, #tpu.memory_space<vmem>>, vector<1x3x1xf32>,
    return
  }
  func.func @transform_0(%arg0: i32) -> (i32, i32, i32, i32) {
    %c0_i32 = arith.constant 0 : i32
    %c0_i32_0 = arith.constant 0 : i32
    %c0_i32_1 = arith.constant 0 : i32
    %c0_i32_2 = arith.constant 0 : i32
    return %arg0, %c0_i32, %c0_i32_0, %c0_i32_1 : i32, i32, i32, i32
  }
  func.func @transform_1(%arg0: i32) -> (i32, i32) {
    %c0_i32 = arith.constant 0 : i32
    %c0_i32_0 = arith.constant 0 : i32
    %c0_i32_1 = arith.constant 0 : i32
    return %c0_i32, %c0_i32_0 : i32, i32
  }
  func.func @transform_2(%arg0: i32) -> (i32, i32) {
    %c0_i32 = arith.constant 0 : i32
    %c0_i32_0 = arith.constant 0 : i32
    %c0_i32_1 = arith.constant 0 : i32
    return %c0_i32, %c0_i32_0 : i32, i32
  }
  func.func @transform_3(%arg0: i32) -> (i32, i32, i32) {
    %c0_i32 = arith.constant 0 : i32
    %c0_i32_0 = arith.constant 0 : i32
    %c0_i32_1 = arith.constant 0 : i32
    %c0_i32_2 = arith.constant 0 : i32
    return %c0_i32, %c0_i32_0, %c0_i32_1 : i32, i32, i32
  }
  func.func @transform_4(%arg0: i32) -> (i32, i32) {
    %c0_i32 = arith.constant 0 : i32
    %c0_i32_0 = arith.constant 0 : i32
    %c0_i32_1 = arith.constant 0 : i32
    return %c0_i32, %c0_i32_0 : i32, i32
  }
  func.func @transform_5(%arg0: i32) -> (i32, i32, i32) {
    %c0_i32 = arith.constant 0 : i32
    %c0_i32_0 = arith.constant 0 : i32
    %c0_i32_1 = arith.constant 0 : i32
    return %arg0, %c0_i32, %c0_i32_0 : i32, i32, i32
  }
}

</mosaic_0001>

<llo_original>
// kernel: cnn_forward.2
$region0: #{cnn_forward.2}
  #allocation0 [shape = 'u32[]', space=smem, size = 0x4, offset = 0x4, fixed_abs, tag = 'smem constant byte address 0x4 - core index']
  #allocation1 [shape = 'u32[72,128]{1,0:T(1,128)}', space=vmem, size = 0x9000, scoped, tag = 'internal scratch']
  %s0 = inlined_call_operand.vmem [shape: bf16[2,4,27,4096], index: 0, kind: input, shape index: {}]
  %s1 = inlined_call_operand.vmem [shape: bf16[32,27], index: 1, kind: input, shape index: {}]
  %s2 = inlined_call_operand.vmem [shape: f32[32,1], index: 2, kind: input, shape index: {}]
  %s3 = inlined_call_operand.vmem [shape: bf16[2,32,4096], index: 3, kind: output, shape index: {}]
  %s4 = sld [smem:[#allocation0]]
  $region52: #{cnn_forward.2} parent=0
    _
  %s6 = ssub.s32 1, %s4
  %s7 = scalar_select 0, %s6, %s4
  loop: start=0, step=1, limit=4
  $region2: #{cnn_forward.2} parent=0 // loop_pre_header
    _
  $region3: #{cnn_forward.2} parent=0 // loop_header
    %s9 = sphi 0, %s13
    %p10 = scmp.ge.s32.totalorder %s9, 4
    %s19 = sphi 0, %s21
    %s22 = sphi 0, %s19
    %s23 = sphi 0, %s22
    %s39 = sphi 0, %s23
    %s43 = sphi 0, %s43
    %s45 = sphi 0, %s43
    %s46 = sphi 0, %s45
    %s60 = sphi 0, %s46
    %s64 = sphi 0, %s64
    %s66 = sphi 0, %s64
    %s67 = sphi 0, %s66
    %s81 = sphi 0, %s67
    %s87 = sphi 0, %s89
    %s90 = sphi 0, %s87
    %s91 = sphi 0, %s90
    %s107 = sphi 0, %s91
  $region4: #{cnn_forward.2} parent=0 // loop_header_branch
    %12 = sbr.rel (%p10) target = $region8
  $region5: #{cnn_forward.2} parent=0 // loop_body
    %s14 = ssub.s32 %s9, 1
    %s15 = ssub.s32 %s9, 2
    %s16 = sadd.s32 %s9, 1
    %s17 = ssub.s32 %s9, %s16
    %p18 = scmp.eq.s32.totalorder %s17, 0
    %s20 = sadd.s32 %s19, 1
    %s21 = scalar_select %p18, %s19, %s20
    %p24 = pneg %p18
    %p25 = scmp.eq.s32.totalorder %s9, 1
    %p26 = por %p24, %p25
    %p27 = scmp.ne.s32.totalorder %s19, %s22
    %p28 = scmp.eq.s32.totalorder %s9, 0
    %p29 = por %p27, %p28
    %p30 = scmp.ne.s32.totalorder %s19, %s22
    %p31 = scmp.eq.s32.totalorder %s14, 1
    %p32 = por %p30, %p31
    %p33 = scmp.ne.s32.totalorder %s22, %s23
    %p34 = scmp.eq.s32.totalorder %s14, 0
    %p35 = por %p33, %p34
    %p36 = scmp.ne.s32.totalorder %s22, %s23
    %p37 = scmp.eq.s32.totalorder %s15, 1
    %p38 = por %p36, %p37
    %p40 = scmp.ne.s32.totalorder %s23, %s39
    %p41 = scmp.eq.s32.totalorder %s15, 0
    %p42 = por %p40, %p41
    %s44 = sadd.s32 %s43, 1
    %p47 = scmp.eq.s32.totalorder %s9, 1
    %p48 = scmp.ne.s32.totalorder %s43, %s45
    %p49 = scmp.eq.s32.totalorder %s9, 0
    %p50 = por %p48, %p49
    %p51 = scmp.ne.s32.totalorder %s43, %s45
    %p52 = scmp.eq.s32.totalorder %s14, 1
    %p53 = por %p51, %p52
    %p54 = scmp.ne.s32.totalorder %s45, %s46
    %p55 = scmp.eq.s32.totalorder %s14, 0
    %p56 = por %p54, %p55
    %p57 = scmp.ne.s32.totalorder %s45, %s46
    %p58 = scmp.eq.s32.totalorder %s15, 1
    %p59 = por %p57, %p58
    %p61 = scmp.ne.s32.totalorder %s46, %s60
    %p62 = scmp.eq.s32.totalorder %s15, 0
    %p63 = por %p61, %p62
    %s65 = sadd.s32 %s64, 1
    %p68 = scmp.eq.s32.totalorder %s9, 1
    %p69 = scmp.ne.s32.totalorder %s64, %s66
    %p70 = scmp.eq.s32.totalorder %s9, 0
    %p71 = por %p69, %p70
    %p72 = scmp.ne.s32.totalorder %s64, %s66
    %p73 = scmp.eq.s32.totalorder %s14, 1
    %p74 = por %p72, %p73
    %p75 = scmp.ne.s32.totalorder %s66, %s67
    %p76 = scmp.eq.s32.totalorder %s14, 0
    %p77 = por %p75, %p76
    %p78 = scmp.ne.s32.totalorder %s66, %s67
    %p79 = scmp.eq.s32.totalorder %s15, 1
    %p80 = por %p78, %p79
    %p82 = scmp.ne.s32.totalorder %s67, %s81
    %p83 = scmp.eq.s32.totalorder %s15, 0
    %p84 = por %p82, %p83
    %s85 = ssub.s32 %s9, %s16
    %p86 = scmp.eq.s32.totalorder %s85, 0
    %s88 = sadd.s32 %s87, 1
    %s89 = scalar_select %p86, %s87, %s88
    %p92 = pneg %p86
    %p93 = scmp.eq.s32.totalorder %s9, 1
    %p94 = por %p92, %p93
    %p95 = scmp.ne.s32.totalorder %s87, %s90
    %p96 = scmp.eq.s32.totalorder %s9, 0
    %p97 = por %p95, %p96
    %p98 = scmp.ne.s32.totalorder %s87, %s90
    %p99 = scmp.eq.s32.totalorder %s14, 1
    %p100 = por %p98, %p99
    %p101 = scmp.ne.s32.totalorder %s90, %s91
    %p102 = scmp.eq.s32.totalorder %s14, 0
    %p103 = por %p101, %p102
    %p104 = scmp.ne.s32.totalorder %s90, %s91
    %p105 = scmp.eq.s32.totalorder %s15, 1
    %p106 = por %p104, %p105
    %p108 = scmp.ne.s32.totalorder %s91, %s107
    %p109 = scmp.eq.s32.totalorder %s15, 0
    %p110 = por %p108, %p109
    %p111 = scmp.le.s32.totalorder 1, %s9
    %p112 = scmp.lt.s32.totalorder %s9, 3
    %p113 = pnand %p111, %p112
    %p114 = pneg %p113
    // Predicated region
    $region9: #{cnn_forward.2} parent=5 // pred_check
      _
    $region10: #{cnn_forward.2} parent=5 // pred_check_branch
      %116 = sbr.rel (%p113) target = $region12
    $region11: #{cnn_forward.2} parent=5 // pred_region
      %s117 = ssub.s32 %s9, 1
      // Predicated region
      $region13: #{cnn_forward.2} parent=11 // pred_check
        %p118 = pneg %p56
      $region14: #{cnn_forward.2} parent=11 // pred_check_branch
        %120 = sbr.rel (%p118) target = $region16
      $region15: #{cnn_forward.2} parent=11 // pred_region
        _
      $region16: #{cnn_forward.2} parent=11 // pred_fallthru
        _
      // Predicated region
      $region17: #{cnn_forward.2} parent=11 // pred_check
        %p121 = pneg %p77
      $region18: #{cnn_forward.2} parent=11 // pred_check_branch
        %123 = sbr.rel (%p121) target = $region20
      $region19: #{cnn_forward.2} parent=11 // pred_region
        _
      $region20: #{cnn_forward.2} parent=11 // pred_fallthru
        _
    $region12: #{cnn_forward.2} parent=5 // pred_fallthru
      _
    %p124 = scmp.lt.s32.totalorder %s9, 2
    // Predicated region
    $region21: #{cnn_forward.2} parent=5 // pred_check
      %p125 = pneg %p124
    $region22: #{cnn_forward.2} parent=5 // pred_check_branch
      %127 = sbr.rel (%p125) target = $region24
    $region23: #{cnn_forward.2} parent=5 // pred_region
      // Predicated region
      $region25: #{cnn_forward.2} parent=23 // pred_check
        %p128 = pneg %p29
      $region26: #{cnn_forward.2} parent=23 // pred_check_branch
        %130 = sbr.rel (%p128) target = $region28
      $region27: #{cnn_forward.2} parent=23 // pred_region
        %p131 = scmp.lt.s32.totalorder %s9, 1
        %s132 = scalar_select %p131, %s9, 1
        %s133 = smul.addr %s132, 512
        %s134 = smul.addr %s133, 4
        %s135 = scalar_lea.vmem %s0, %s134
      $region28: #{cnn_forward.2} parent=23 // pred_fallthru
        _
    $region24: #{cnn_forward.2} parent=5 // pred_fallthru
      _
    %p136 = scmp.le.s32.totalorder 1, %s9
    %p137 = scmp.lt.s32.totalorder %s9, 3
    %p138 = pnand %p136, %p137
    %p139 = pneg %p138
    // Predicated region
    $region29: #{cnn_forward.2} parent=5 // pred_check
      _
    $region30: #{cnn_forward.2} parent=5 // pred_check_branch
      %141 = sbr.rel (%p138) target = $region32
    $region31: #{cnn_forward.2} parent=5 // pred_region
      %s142 = ssub.s32 %s9, 1
      %p143 = scmp.lt.s32.totalorder %s14, 1
      %s144 = scalar_select %p143, %s14, 1
      %s145 = smul.addr %s144, 512
      %s146 = smul.addr %s145, 4
      %s147 = scalar_lea.vmem %s0, %s146
      %p148 = pneg %p35
      %p149 = pneg %p32
      %p150 = pneg %p56
      %p151 = pneg %p53
      %p152 = pneg %p77
      %p153 = pneg %p74
      %p154 = pneg %p103
      %p155 = pneg %p100
      %p156 = scmp.lt.s32.totalorder %s14, 1
      %s157 = scalar_select %p156, %s14, 1
      %s158 = smul.addr %s157, 128
      %s159 = smul.addr %s158, 4
      %s160 = scalar_lea.vmem %s3, %s159
      %p161 = scmp.lt.s32.totalorder %s14, 1
      %s162 = scalar_select %p161, %s14, 1
      %s163 = smul.addr %s162, 512
      %s164 = smul.addr %s163, 4
      %s165 = scalar_lea.vmem %s0, %s164
      %p166 = scmp.lt.s32.totalorder %s14, 1
      %s167 = scalar_select %p166, %s14, 1
      %s168 = smul.addr %s167, 128
      %s169 = smul.addr %s168, 4
      %s170 = scalar_lea.vmem %s3, %s169
      loop: start=0, step=1, limit=8
      $region33: #{cnn_forward.2} parent=31 // loop_pre_header
        _
      $region34: #{cnn_forward.2} parent=31 // loop_header
        %s173 = sphi 0, %s177
        %p174 = scmp.ge.s32.totalorder %s173, 8
      $region35: #{cnn_forward.2} parent=31 // loop_header_branch
        %176 = sbr.rel (%p174) target = $region39
      $region36: #{cnn_forward.2} parent=31 // loop_body
        %s178 = smul.u32 %s173, 512
        %v179 = vld [vmem:[%s1] sm:$0xf]
        %v180 = vld [vmem:[%s1 + $0x4] sm:$0xf]
        %v181 = vld [vmem:[%s1 + $0x8] sm:$0xf]
        %v182 = vld [vmem:[%s1 + $0xc] sm:$0xf]
        %s183 = sshra.s32 %s178, 7
        %s184 = sand.u32 %s178, 127
        %s185 = smul.addr %s183, 4
        %s186 = scalar_lea.vmem %s165, %s185
        %v187 = vld [vmem:[%s186] sm:$0xff]
        %v188 = vld [vmem:[%s186 + $0x8] sm:$0xff]
        %v189 = vld [vmem:[%s186 + $0x80] sm:$0xff]
        %v190 = vld [vmem:[%s186 + $0x88] sm:$0xff]
        %v191 = vld [vmem:[%s186 + $0x100] sm:$0xff]
        %v192 = vld [vmem:[%s186 + $0x108] sm:$0xff]
        %v193 = vld [vmem:[%s186 + $0x180] sm:$0x33]
        %v194 = vld [vmem:[%s186 + $0x188] sm:$0x33]
        %v199 = vunpack.c.l.b16 %v179
        %v200 = vunpack.c.l.b16 %v180
        %v201 = vunpack.c.l.b16 %v181
        %v202 = vunpack.c.l.b16 %v182
        %v203 = vpack.c.b16 %v200, %v199
        %v204 = vpack.c.b16 %v202, %v201
        %v213 = vunpack.c.l.b16 %v187
        %v214 = vunpack.c.h.b16 %v187
        %v215 = vunpack.c.l.b16 %v188
        %v216 = vunpack.c.h.b16 %v188
        %v217 = vunpack.c.l.b16 %v189
        %v218 = vunpack.c.h.b16 %v189
        %v219 = vunpack.c.l.b16 %v190
        %v220 = vunpack.c.h.b16 %v190
        %v221 = vunpack.c.l.b16 %v191
        %v222 = vunpack.c.h.b16 %v191
        %v223 = vunpack.c.l.b16 %v192
        %v224 = vunpack.c.h.b16 %v192
        %v225 = vunpack.c.l.b16 %v193
        %v226 = vunpack.c.h.b16 %v193
        %v227 = vunpack.c.l.b16 %v194
        %v228 = vunpack.c.h.b16 %v194
        %v229 = vpack.c.b16 %v217, %v213
        %v230 = vpack.c.b16 %v218, %v214
        %v231 = vpack.c.b16 %v219, %v215
        %v232 = vpack.c.b16 %v220, %v216
        %v233 = vpack.c.b16 %v225, %v221
        %v234 = vpack.c.b16 %v226, %v222
        %v235 = vpack.c.b16 %v227, %v223
        %v236 = vpack.c.b16 %v228, %v224
        %vm241 = vcmask 220160
        %v243 = vsel %vm241, %v203, 0
        %v246 = vsel %vm241, %v204, 0
        %vm248 = vcmask 1044480
        %vm249 = vcmask 1045504
        %v250 = vsel %vm248, 4294967295, 65535
        %v251 = vsel %vm249, %v250, 0
        %v253 = vand.u32 %v233, %v251
        %v256 = vand.u32 %v234, %v251
        %v259 = vand.u32 %v235, %v251
        %v262 = vand.u32 %v236, %v251
        %264 = vmatpush.bf16.msra.mxu0 0
        %265 = vmatpush.bf16.msra.mxu0 0
        %266 = vmatpush.bf16.msra.mxu0 0
        %267 = vmatpush.bf16.msra.mxu0 0
        %268 = vmatpush.bf16.msra.mxu0 0
        %269 = vmatpush.bf16.msra.mxu0 0
        %270 = vmatpush.bf16.msra.mxu0 %v253
        %271 = vmatpush.bf16.msra.mxu0 %v229
        %272 = vmatmul.bf16.gmra.mxu0 %v243
        %v273 = vpop.f32.mrf.mxu0
        %v274 = vadd.f32 0.0, %v273
        %v275 = vpop.f32.mrf.mxu0
        %v276 = vadd.f32 0.0, %v275
        %277 = vmatmul.bf16.gmra.mxu0 %v246
        %v278 = vpop.f32.mrf.mxu0
        %v279 = vadd.f32 0.0, %v278
        %v280 = vpop.f32.mrf.mxu0
        %v281 = vadd.f32 0.0, %v280
        %282 = vdwg.mxu0
        %283 = vmatpush.bf16.msra.mxu0 0
        %284 = vmatpush.bf16.msra.mxu0 0
        %285 = vmatpush.bf16.msra.mxu0 0
        %286 = vmatpush.bf16.msra.mxu0 0
        %287 = vmatpush.bf16.msra.mxu0 0
        %288 = vmatpush.bf16.msra.mxu0 0
        %289 = vmatpush.bf16.msra.mxu0 %v256
        %290 = vmatpush.bf16.msra.mxu0 %v230
        %291 = vmatmul.bf16.gmra.mxu0 %v243
        %v292 = vpop.f32.mrf.mxu0
        %v293 = vadd.f32 0.0, %v292
        %v294 = vpop.f32.mrf.mxu0
        %v295 = vadd.f32 0.0, %v294
        %296 = vmatmul.bf16.gmra.mxu0 %v246
        %v297 = vpop.f32.mrf.mxu0
        %v298 = vadd.f32 0.0, %v297
        %v299 = vpop.f32.mrf.mxu0
        %v300 = vadd.f32 0.0, %v299
        %301 = vdwg.mxu0
        %302 = vmatpush.bf16.msra.mxu0 0
        %303 = vmatpush.bf16.msra.mxu0 0
        %304 = vmatpush.bf16.msra.mxu0 0
        %305 = vmatpush.bf16.msra.mxu0 0
        %306 = vmatpush.bf16.msra.mxu0 0
        %307 = vmatpush.bf16.msra.mxu0 0
        %308 = vmatpush.bf16.msra.mxu0 %v259
        %309 = vmatpush.bf16.msra.mxu0 %v231
        %310 = vmatmul.bf16.gmra.mxu0 %v243
        %v311 = vpop.f32.mrf.mxu0
        %v312 = vadd.f32 0.0, %v311
        %v313 = vpop.f32.mrf.mxu0
        %v314 = vadd.f32 0.0, %v313
        %315 = vmatmul.bf16.gmra.mxu0 %v246
        %v316 = vpop.f32.mrf.mxu0
        %v317 = vadd.f32 0.0, %v316
        %v318 = vpop.f32.mrf.mxu0
        %v319 = vadd.f32 0.0, %v318
        %320 = vdwg.mxu0
        %321 = vmatpush.bf16.msra.mxu0 0
        %322 = vmatpush.bf16.msra.mxu0 0
        %323 = vmatpush.bf16.msra.mxu0 0
        %324 = vmatpush.bf16.msra.mxu0 0
        %325 = vmatpush.bf16.msra.mxu0 0
        %326 = vmatpush.bf16.msra.mxu0 0
        %327 = vmatpush.bf16.msra.mxu0 %v262
        %328 = vmatpush.bf16.msra.mxu0 %v232
        %329 = vmatmul.bf16.gmra.mxu0 %v243
        %v330 = vpop.f32.mrf.mxu0
        %v331 = vadd.f32 0.0, %v330
        %v332 = vpop.f32.mrf.mxu0
        %v333 = vadd.f32 0.0, %v332
        %334 = vmatmul.bf16.gmra.mxu0 %v246
        %v335 = vpop.f32.mrf.mxu0
        %v336 = vadd.f32 0.0, %v335
        %v337 = vpop.f32.mrf.mxu0
        %v338 = vadd.f32 0.0, %v337
        %339 = vdwg.mxu0
        %s340 = sadd.s32 %s183, 128
        %s341 = smul.addr %s340, 4
        %s342 = scalar_lea.vmem %s165, %s341
        %v343 = vld [vmem:[%s342] sm:$0xff]
        %v344 = vld [vmem:[%s342 + $0x8] sm:$0xff]
        %v345 = vld [vmem:[%s342 + $0x80] sm:$0xff]
        %v346 = vld [vmem:[%s342 + $0x88] sm:$0xff]
        %v347 = vld [vmem:[%s342 + $0x100] sm:$0xff]
        %v348 = vld [vmem:[%s342 + $0x108] sm:$0xff]
        %v349 = vld [vmem:[%s342 + $0x180] sm:$0x33]
        %v350 = vld [vmem:[%s342 + $0x188] sm:$0x33]
        %v359 = vunpack.c.l.b16 %v343
        %v360 = vunpack.c.h.b16 %v343
        %v361 = vunpack.c.l.b16 %v344
        %v362 = vunpack.c.h.b16 %v344
        %v363 = vunpack.c.l.b16 %v345
        %v364 = vunpack.c.h.b16 %v345
        %v365 = vunpack.c.l.b16 %v346
        %v366 = vunpack.c.h.b16 %v346
        %v367 = vunpack.c.l.b16 %v347
        %v368 = vunpack.c.h.b16 %v347
        %v369 = vunpack.c.l.b16 %v348
        %v370 = vunpack.c.h.b16 %v348
        %v371 = vunpack.c.l.b16 %v349
        %v372 = vunpack.c.h.b16 %v349
        %v373 = vunpack.c.l.b16 %v350
        %v374 = vunpack.c.h.b16 %v350
        %v375 = vpack.c.b16 %v363, %v359
        %v376 = vpack.c.b16 %v364, %v360
        %v377 = vpack.c.b16 %v365, %v361
        %v378 = vpack.c.b16 %v366, %v362
        %v379 = vpack.c.b16 %v371, %v367
        %v380 = vpack.c.b16 %v372, %v368
        %v381 = vpack.c.b16 %v373, %v369
        %v382 = vpack.c.b16 %v374, %v370
        %v388 = vand.u32 %v379, %v251
        %v391 = vand.u32 %v380, %v251
        %v394 = vand.u32 %v381, %v251
        %v397 = vand.u32 %v382, %v251
        %399 = vmatpush.bf16.msra.mxu0 0
        %400 = vmatpush.bf16.msra.mxu0 0
        %401 = vmatpush.bf16.msra.mxu0 0
        %402 = vmatpush.bf16.msra.mxu0 0
        %403 = vmatpush.bf16.msra.mxu0 0
        %404 = vmatpush.bf16.msra.mxu0 0
        %405 = vmatpush.bf16.msra.mxu0 %v388
        %406 = vmatpush.bf16.msra.mxu0 %v375
        %407 = vmatmul.bf16.gmra.mxu0 %v243
        %v408 = vpop.f32.mrf.mxu0
        %v409 = vadd.f32 0.0, %v408
        %v410 = vpop.f32.mrf.mxu0
        %v411 = vadd.f32 0.0, %v410
        %412 = vmatmul.bf16.gmra.mxu0 %v246
        %v413 = vpop.f32.mrf.mxu0
        %v414 = vadd.f32 0.0, %v413
        %v415 = vpop.f32.mrf.mxu0
        %v416 = vadd.f32 0.0, %v415
        %417 = vdwg.mxu0
        %418 = vmatpush.bf16.msra.mxu0 0
        %419 = vmatpush.bf16.msra.mxu0 0
        %420 = vmatpush.bf16.msra.mxu0 0
        %421 = vmatpush.bf16.msra.mxu0 0
        %422 = vmatpush.bf16.msra.mxu0 0
        %423 = vmatpush.bf16.msra.mxu0 0
        %424 = vmatpush.bf16.msra.mxu0 %v391
        %425 = vmatpush.bf16.msra.mxu0 %v376
        %426 = vmatmul.bf16.gmra.mxu0 %v243
        %v427 = vpop.f32.mrf.mxu0
        %v428 = vadd.f32 0.0, %v427
        %v429 = vpop.f32.mrf.mxu0
        %v430 = vadd.f32 0.0, %v429
        %431 = vmatmul.bf16.gmra.mxu0 %v246
        %v432 = vpop.f32.mrf.mxu0
        %v433 = vadd.f32 0.0, %v432
        %v434 = vpop.f32.mrf.mxu0
        %v435 = vadd.f32 0.0, %v434
        %436 = vdwg.mxu0
        %437 = vmatpush.bf16.msra.mxu0 0
        %438 = vmatpush.bf16.msra.mxu0 0
        %439 = vmatpush.bf16.msra.mxu0 0
        %440 = vmatpush.bf16.msra.mxu0 0
        %441 = vmatpush.bf16.msra.mxu0 0
        %442 = vmatpush.bf16.msra.mxu0 0
        %443 = vmatpush.bf16.msra.mxu0 %v394
        %444 = vmatpush.bf16.msra.mxu0 %v377
        %445 = vmatmul.bf16.gmra.mxu0 %v243
        %v446 = vpop.f32.mrf.mxu0
        %v447 = vadd.f32 0.0, %v446
        %v448 = vpop.f32.mrf.mxu0
        %v449 = vadd.f32 0.0, %v448
        %450 = vmatmul.bf16.gmra.mxu0 %v246
        %v451 = vpop.f32.mrf.mxu0
        %v452 = vadd.f32 0.0, %v451
        %v453 = vpop.f32.mrf.mxu0
        %v454 = vadd.f32 0.0, %v453
        %455 = vdwg.mxu0
        %456 = vmatpush.bf16.msra.mxu0 0
        %457 = vmatpush.bf16.msra.mxu0 0
        %458 = vmatpush.bf16.msra.mxu0 0
        %459 = vmatpush.bf16.msra.mxu0 0
        %460 = vmatpush.bf16.msra.mxu0 0
        %461 = vmatpush.bf16.msra.mxu0 0
        %462 = vmatpush.bf16.msra.mxu0 %v397
        %463 = vmatpush.bf16.msra.mxu0 %v378
        %464 = vmatmul.bf16.gmra.mxu0 %v243
        %v465 = vpop.f32.mrf.mxu0
        %v466 = vadd.f32 0.0, %v465
        %v467 = vpop.f32.mrf.mxu0
        %v468 = vadd.f32 0.0, %v467
        %469 = vmatmul.bf16.gmra.mxu0 %v246
        %v470 = vpop.f32.mrf.mxu0
        %v471 = vadd.f32 0.0, %v470
        %v472 = vpop.f32.mrf.mxu0
        %v473 = vadd.f32 0.0, %v472
        %474 = vdwg.mxu0
        %v475 = vmax.f32 %v274, %v409
        %v476 = vmax.f32 %v293, %v428
        %v477 = vmax.f32 %v312, %v447
        %v478 = vmax.f32 %v331, %v466
        %v479 = vmax.f32 %v276, %v411
        %v480 = vmax.f32 %v295, %v430
        %v481 = vmax.f32 %v314, %v449
        %v482 = vmax.f32 %v333, %v468
        %v483 = vmax.f32 %v279, %v414
        %v484 = vmax.f32 %v298, %v433
        %v485 = vmax.f32 %v317, %v452
        %v486 = vmax.f32 %v336, %v471
        %v487 = vmax.f32 %v281, %v416
        %v488 = vmax.f32 %v300, %v435
        %v489 = vmax.f32 %v319, %v454
        %v490 = vmax.f32 %v338, %v473
        %s491 = sadd.s32 %s183, 256
        %s492 = smul.addr %s491, 4
        %s493 = scalar_lea.vmem %s165, %s492
        %v494 = vld [vmem:[%s493] sm:$0xff]
        %v495 = vld [vmem:[%s493 + $0x8] sm:$0xff]
        %v496 = vld [vmem:[%s493 + $0x80] sm:$0xff]
        %v497 = vld [vmem:[%s493 + $0x88] sm:$0xff]
        %v498 = vld [vmem:[%s493 + $0x100] sm:$0xff]
        %v499 = vld [vmem:[%s493 + $0x108] sm:$0xff]
        %v500 = vld [vmem:[%s493 + $0x180] sm:$0x33]
        %v501 = vld [vmem:[%s493 + $0x188] sm:$0x33]
        %v510 = vunpack.c.l.b16 %v494
        %v511 = vunpack.c.h.b16 %v494
        %v512 = vunpack.c.l.b16 %v495
        %v513 = vunpack.c.h.b16 %v495
        %v514 = vunpack.c.l.b16 %v496
        %v515 = vunpack.c.h.b16 %v496
        %v516 = vunpack.c.l.b16 %v497
        %v517 = vunpack.c.h.b16 %v497
        %v518 = vunpack.c.l.b16 %v498
        %v519 = vunpack.c.h.b16 %v498
        %v520 = vunpack.c.l.b16 %v499
        %v521 = vunpack.c.h.b16 %v499
        %v522 = vunpack.c.l.b16 %v500
        %v523 = vunpack.c.h.b16 %v500
        %v524 = vunpack.c.l.b16 %v501
        %v525 = vunpack.c.h.b16 %v501
        %v526 = vpack.c.b16 %v514, %v510
        %v527 = vpack.c.b16 %v515, %v511
        %v528 = vpack.c.b16 %v516, %v512
        %v529 = vpack.c.b16 %v517, %v513
        %v530 = vpack.c.b16 %v522, %v518
        %v531 = vpack.c.b16 %v523, %v519
        %v532 = vpack.c.b16 %v524, %v520
        %v533 = vpack.c.b16 %v525, %v521
        %v539 = vand.u32 %v530, %v251
        %v542 = vand.u32 %v531, %v251
        %v545 = vand.u32 %v532, %v251
        %v548 = vand.u32 %v533, %v251
        %550 = vmatpush.bf16.msra.mxu0 0
        %551 = vmatpush.bf16.msra.mxu0 0
        %552 = vmatpush.bf16.msra.mxu0 0
        %553 = vmatpush.bf16.msra.mxu0 0
        %554 = vmatpush.bf16.msra.mxu0 0
        %555 = vmatpush.bf16.msra.mxu0 0
        %556 = vmatpush.bf16.msra.mxu0 %v539
        %557 = vmatpush.bf16.msra.mxu0 %v526
        %558 = vmatmul.bf16.gmra.mxu0 %v243
        %v559 = vpop.f32.mrf.mxu0
        %v560 = vadd.f32 0.0, %v559
        %v561 = vpop.f32.mrf.mxu0
        %v562 = vadd.f32 0.0, %v561
        %563 = vmatmul.bf16.gmra.mxu0 %v246
        %v564 = vpop.f32.mrf.mxu0
        %v565 = vadd.f32 0.0, %v564
        %v566 = vpop.f32.mrf.mxu0
        %v567 = vadd.f32 0.0, %v566
        %568 = vdwg.mxu0
        %569 = vmatpush.bf16.msra.mxu0 0
        %570 = vmatpush.bf16.msra.mxu0 0
        %571 = vmatpush.bf16.msra.mxu0 0
        %572 = vmatpush.bf16.msra.mxu0 0
        %573 = vmatpush.bf16.msra.mxu0 0
        %574 = vmatpush.bf16.msra.mxu0 0
        %575 = vmatpush.bf16.msra.mxu0 %v542
        %576 = vmatpush.bf16.msra.mxu0 %v527
        %577 = vmatmul.bf16.gmra.mxu0 %v243
        %v578 = vpop.f32.mrf.mxu0
        %v579 = vadd.f32 0.0, %v578
        %v580 = vpop.f32.mrf.mxu0
        %v581 = vadd.f32 0.0, %v580
        %582 = vmatmul.bf16.gmra.mxu0 %v246
        %v583 = vpop.f32.mrf.mxu0
        %v584 = vadd.f32 0.0, %v583
        %v585 = vpop.f32.mrf.mxu0
        %v586 = vadd.f32 0.0, %v585
        %587 = vdwg.mxu0
        %588 = vmatpush.bf16.msra.mxu0 0
        %589 = vmatpush.bf16.msra.mxu0 0
        %590 = vmatpush.bf16.msra.mxu0 0
        %591 = vmatpush.bf16.msra.mxu0 0
        %592 = vmatpush.bf16.msra.mxu0 0
        %593 = vmatpush.bf16.msra.mxu0 0
        %594 = vmatpush.bf16.msra.mxu0 %v545
        %595 = vmatpush.bf16.msra.mxu0 %v528
        %596 = vmatmul.bf16.gmra.mxu0 %v243
        %v597 = vpop.f32.mrf.mxu0
        %v598 = vadd.f32 0.0, %v597
        %v599 = vpop.f32.mrf.mxu0
        %v600 = vadd.f32 0.0, %v599
        %601 = vmatmul.bf16.gmra.mxu0 %v246
        %v602 = vpop.f32.mrf.mxu0
        %v603 = vadd.f32 0.0, %v602
        %v604 = vpop.f32.mrf.mxu0
        %v605 = vadd.f32 0.0, %v604
        %606 = vdwg.mxu0
        %607 = vmatpush.bf16.msra.mxu0 0
        %608 = vmatpush.bf16.msra.mxu0 0
        %609 = vmatpush.bf16.msra.mxu0 0
        %610 = vmatpush.bf16.msra.mxu0 0
        %611 = vmatpush.bf16.msra.mxu0 0
        %612 = vmatpush.bf16.msra.mxu0 0
        %613 = vmatpush.bf16.msra.mxu0 %v548
        %614 = vmatpush.bf16.msra.mxu0 %v529
        %615 = vmatmul.bf16.gmra.mxu0 %v243
        %v616 = vpop.f32.mrf.mxu0
        %v617 = vadd.f32 0.0, %v616
        %v618 = vpop.f32.mrf.mxu0
        %v619 = vadd.f32 0.0, %v618
        %620 = vmatmul.bf16.gmra.mxu0 %v246
        %v621 = vpop.f32.mrf.mxu0
        %v622 = vadd.f32 0.0, %v621
        %v623 = vpop.f32.mrf.mxu0
        %v624 = vadd.f32 0.0, %v623
        %625 = vdwg.mxu0
        %v626 = vmax.f32 %v475, %v560
        %v627 = vmax.f32 %v476, %v579
        %v628 = vmax.f32 %v477, %v598
        %v629 = vmax.f32 %v478, %v617
        %v630 = vmax.f32 %v479, %v562
        %v631 = vmax.f32 %v480, %v581
        %v632 = vmax.f32 %v481, %v600
        %v633 = vmax.f32 %v482, %v619
        %v634 = vmax.f32 %v483, %v565
        %v635 = vmax.f32 %v484, %v584
        %v636 = vmax.f32 %v485, %v603
        %v637 = vmax.f32 %v486, %v622
        %v638 = vmax.f32 %v487, %v567
        %v639 = vmax.f32 %v488, %v586
        %v640 = vmax.f32 %v489, %v605
        %v641 = vmax.f32 %v490, %v624
        %s642 = sadd.s32 %s183, 384
        %s643 = smul.addr %s642, 4
        %s644 = scalar_lea.vmem %s165, %s643
        %v645 = vld [vmem:[%s644] sm:$0xff]
        %v646 = vld [vmem:[%s644 + $0x8] sm:$0xff]
        %v647 = vld [vmem:[%s644 + $0x80] sm:$0xff]
        %v648 = vld [vmem:[%s644 + $0x88] sm:$0xff]
        %v649 = vld [vmem:[%s644 + $0x100] sm:$0xff]
        %v650 = vld [vmem:[%s644 + $0x108] sm:$0xff]
        %v651 = vld [vmem:[%s644 + $0x180] sm:$0x33]
        %v652 = vld [vmem:[%s644 + $0x188] sm:$0x33]
        %v661 = vunpack.c.l.b16 %v645
        %v662 = vunpack.c.h.b16 %v645
        %v663 = vunpack.c.l.b16 %v646
        %v664 = vunpack.c.h.b16 %v646
        %v665 = vunpack.c.l.b16 %v647
        %v666 = vunpack.c.h.b16 %v647
        %v667 = vunpack.c.l.b16 %v648
        %v668 = vunpack.c.h.b16 %v648
        %v669 = vunpack.c.l.b16 %v649
        %v670 = vunpack.c.h.b16 %v649
        %v671 = vunpack.c.l.b16 %v650
        %v672 = vunpack.c.h.b16 %v650
        %v673 = vunpack.c.l.b16 %v651
        %v674 = vunpack.c.h.b16 %v651
        %v675 = vunpack.c.l.b16 %v652
        %v676 = vunpack.c.h.b16 %v652
        %v677 = vpack.c.b16 %v665, %v661
        %v678 = vpack.c.b16 %v666, %v662
        %v679 = vpack.c.b16 %v667, %v663
        %v680 = vpack.c.b16 %v668, %v664
        %v681 = vpack.c.b16 %v673, %v669
        %v682 = vpack.c.b16 %v674, %v670
        %v683 = vpack.c.b16 %v675, %v671
        %v684 = vpack.c.b16 %v676, %v672
        %v690 = vand.u32 %v681, %v251
        %v693 = vand.u32 %v682, %v251
        %v696 = vand.u32 %v683, %v251
        %v699 = vand.u32 %v684, %v251
        %701 = vmatpush.bf16.msra.mxu0 0
        %702 = vmatpush.bf16.msra.mxu0 0
        %703 = vmatpush.bf16.msra.mxu0 0
        %704 = vmatpush.bf16.msra.mxu0 0
        %705 = vmatpush.bf16.msra.mxu0 0
        %706 = vmatpush.bf16.msra.mxu0 0
        %707 = vmatpush.bf16.msra.mxu0 %v690
        %708 = vmatpush.bf16.msra.mxu0 %v677
        %709 = vmatmul.bf16.gmra.mxu0 %v243
        %v710 = vpop.f32.mrf.mxu0
        %v711 = vadd.f32 0.0, %v710
        %v712 = vpop.f32.mrf.mxu0
        %v713 = vadd.f32 0.0, %v712
        %714 = vmatmul.bf16.gmra.mxu0 %v246
        %v715 = vpop.f32.mrf.mxu0
        %v716 = vadd.f32 0.0, %v715
        %v717 = vpop.f32.mrf.mxu0
        %v718 = vadd.f32 0.0, %v717
        %719 = vdwg.mxu0
        %720 = vmatpush.bf16.msra.mxu0 0
        %721 = vmatpush.bf16.msra.mxu0 0
        %722 = vmatpush.bf16.msra.mxu0 0
        %723 = vmatpush.bf16.msra.mxu0 0
        %724 = vmatpush.bf16.msra.mxu0 0
        %725 = vmatpush.bf16.msra.mxu0 0
        %726 = vmatpush.bf16.msra.mxu0 %v693
        %727 = vmatpush.bf16.msra.mxu0 %v678
        %728 = vmatmul.bf16.gmra.mxu0 %v243
        %v729 = vpop.f32.mrf.mxu0
        %v730 = vadd.f32 0.0, %v729
        %v731 = vpop.f32.mrf.mxu0
        %v732 = vadd.f32 0.0, %v731
        %733 = vmatmul.bf16.gmra.mxu0 %v246
        %v734 = vpop.f32.mrf.mxu0
        %v735 = vadd.f32 0.0, %v734
        %v736 = vpop.f32.mrf.mxu0
        %v737 = vadd.f32 0.0, %v736
        %738 = vdwg.mxu0
        %739 = vmatpush.bf16.msra.mxu0 0
        %740 = vmatpush.bf16.msra.mxu0 0
        %741 = vmatpush.bf16.msra.mxu0 0
        %742 = vmatpush.bf16.msra.mxu0 0
        %743 = vmatpush.bf16.msra.mxu0 0
        %744 = vmatpush.bf16.msra.mxu0 0
        %745 = vmatpush.bf16.msra.mxu0 %v696
        %746 = vmatpush.bf16.msra.mxu0 %v679
        %747 = vmatmul.bf16.gmra.mxu0 %v243
        %v748 = vpop.f32.mrf.mxu0
        %v749 = vadd.f32 0.0, %v748
        %v750 = vpop.f32.mrf.mxu0
        %v751 = vadd.f32 0.0, %v750
        %752 = vmatmul.bf16.gmra.mxu0 %v246
        %v753 = vpop.f32.mrf.mxu0
        %v754 = vadd.f32 0.0, %v753
        %v755 = vpop.f32.mrf.mxu0
        %v756 = vadd.f32 0.0, %v755
        %757 = vdwg.mxu0
        %758 = vmatpush.bf16.msra.mxu0 0
        %759 = vmatpush.bf16.msra.mxu0 0
        %760 = vmatpush.bf16.msra.mxu0 0
        %761 = vmatpush.bf16.msra.mxu0 0
        %762 = vmatpush.bf16.msra.mxu0 0
        %763 = vmatpush.bf16.msra.mxu0 0
        %764 = vmatpush.bf16.msra.mxu0 %v699
        %765 = vmatpush.bf16.msra.mxu0 %v680
        %766 = vmatmul.bf16.gmra.mxu0 %v243
        %v767 = vpop.f32.mrf.mxu0
        %v768 = vadd.f32 0.0, %v767
        %v769 = vpop.f32.mrf.mxu0
        %v770 = vadd.f32 0.0, %v769
        %771 = vmatmul.bf16.gmra.mxu0 %v246
        %v772 = vpop.f32.mrf.mxu0
        %v773 = vadd.f32 0.0, %v772
        %v774 = vpop.f32.mrf.mxu0
        %v775 = vadd.f32 0.0, %v774
        %776 = vdwg.mxu0
        %v777 = vmax.f32 %v626, %v711
        %v778 = vmax.f32 %v627, %v730
        %v779 = vmax.f32 %v628, %v749
        %v780 = vmax.f32 %v629, %v768
        %v781 = vmax.f32 %v630, %v713
        %v782 = vmax.f32 %v631, %v732
        %v783 = vmax.f32 %v632, %v751
        %v784 = vmax.f32 %v633, %v770
        %v785 = vmax.f32 %v634, %v716
        %v786 = vmax.f32 %v635, %v735
        %v787 = vmax.f32 %v636, %v754
        %v788 = vmax.f32 %v637, %v773
        %v789 = vmax.f32 %v638, %v718
        %v790 = vmax.f32 %v639, %v737
        %v791 = vmax.f32 %v640, %v756
        %v792 = vmax.f32 %v641, %v775
        %v793 = vld [vmem:[%s2] sm:$0xff]
        %v794 = vld [vmem:[%s2 + $0x8] sm:$0xff]
        %v795 = vld [vmem:[%s2 + $0x10] sm:$0xff]
        %v796 = vld [vmem:[%s2 + $0x18] sm:$0xff]
        %798 = vset.pattern.permute.xlu0 0
        %799 = vperm.xlu0 %798, %v793
        %v800 = vpop.permute.xlu0 %799
        %803 = vset.pattern.permute.xlu0 0
        %804 = vperm.xlu0 %803, %v794
        %v805 = vpop.permute.xlu0 %804
        %808 = vset.pattern.permute.xlu0 0
        %809 = vperm.xlu0 %808, %v795
        %v810 = vpop.permute.xlu0 %809
        %813 = vset.pattern.permute.xlu0 0
        %814 = vperm.xlu0 %813, %v796
        %v815 = vpop.permute.xlu0 %814
        %v817 = vadd.f32 %v777, %v800
        %v818 = vadd.f32 %v778, %v800
        %v819 = vadd.f32 %v779, %v800
        %v820 = vadd.f32 %v780, %v800
        %v821 = vadd.f32 %v781, %v805
        %v822 = vadd.f32 %v782, %v805
        %v823 = vadd.f32 %v783, %v805
        %v824 = vadd.f32 %v784, %v805
        %v825 = vadd.f32 %v785, %v810
        %v826 = vadd.f32 %v786, %v810
        %v827 = vadd.f32 %v787, %v810
        %v828 = vadd.f32 %v788, %v810
        %v829 = vadd.f32 %v789, %v815
        %v830 = vadd.f32 %v790, %v815
        %v831 = vadd.f32 %v791, %v815
        %v832 = vadd.f32 %v792, %v815
        %v833 = vmax.f32 %v817, 0.0
        %v834 = vmax.f32 %v818, 0.0
        %v835 = vmax.f32 %v819, 0.0
        %v836 = vmax.f32 %v820, 0.0
        %v837 = vmax.f32 %v821, 0.0
        %v838 = vmax.f32 %v822, 0.0
        %v839 = vmax.f32 %v823, 0.0
        %v840 = vmax.f32 %v824, 0.0
        %v841 = vmax.f32 %v825, 0.0
        %v842 = vmax.f32 %v826, 0.0
        %v843 = vmax.f32 %v827, 0.0
        %v844 = vmax.f32 %v828, 0.0
        %v845 = vmax.f32 %v829, 0.0
        %v846 = vmax.f32 %v830, 0.0
        %v847 = vmax.f32 %v831, 0.0
        %v848 = vmax.f32 %v832, 0.0
        %v849 = vpack.c.bf16 %v834, %v833
        %v850 = vpack.c.bf16 %v836, %v835
        %v851 = vpack.c.bf16 %v838, %v837
        %v852 = vpack.c.bf16 %v840, %v839
        %v853 = vpack.c.bf16 %v842, %v841
        %v854 = vpack.c.bf16 %v844, %v843
        %v855 = vpack.c.bf16 %v846, %v845
        %v856 = vpack.c.bf16 %v848, %v847
        %s857 = smul.addr %s183, 4
        %s858 = scalar_lea.vmem %s170, %s857
        %859 = vst [vmem:[%s858] sm:$0xff] %v849
        %860 = vst [vmem:[%s858 + $0x8] sm:$0xff] %v850
        %861 = vst [vmem:[%s858 + $0x80] sm:$0xff] %v851
        %862 = vst [vmem:[%s858 + $0x88] sm:$0xff] %v852
        %863 = vst [vmem:[%s858 + $0x100] sm:$0xff] %v853
        %864 = vst [vmem:[%s858 + $0x108] sm:$0xff] %v854
        %865 = vst [vmem:[%s858 + $0x180] sm:$0xff] %v855
        %866 = vst [vmem:[%s858 + $0x188] sm:$0xff] %v856
      $region37: #{cnn_forward.2} parent=31 // loop_footer
        %s177 = sadd.s32 1, %s173
      $region38: #{cnn_forward.2} parent=31 // loop_footer_branch
        %172 = sbr.rel target = $region34
      $region39: #{cnn_forward.2} parent=31 // loop_exit
        _
      %p867 = scmp.lt.s32.totalorder %s14, 1
      %s868 = scalar_select %p867, %s14, 1
      %s869 = smul.addr %s868, 128
      %s870 = smul.addr %s869, 4
      %s871 = scalar_lea.vmem %s3, %s870
      // Predicated region
      $region40: #{cnn_forward.2} parent=31 // pred_check
        %p872 = pneg %p100
      $region41: #{cnn_forward.2} parent=31 // pred_check_branch
        %874 = sbr.rel (%p872) target = $region43
      $region42: #{cnn_forward.2} parent=31 // pred_region
        _
      $region43: #{cnn_forward.2} parent=31 // pred_fallthru
        _
    $region32: #{cnn_forward.2} parent=5 // pred_fallthru
      _
    %p875 = scmp.le.s32.totalorder 2, %s9
    // Predicated region
    $region44: #{cnn_forward.2} parent=5 // pred_check
      %p876 = pneg %p875
    $region45: #{cnn_forward.2} parent=5 // pred_check_branch
      %878 = sbr.rel (%p876) target = $region47
    $region46: #{cnn_forward.2} parent=5 // pred_region
      %s879 = ssub.s32 %s9, 2
      // Predicated region
      $region48: #{cnn_forward.2} parent=46 // pred_check
        %p880 = pneg %p106
      $region49: #{cnn_forward.2} parent=46 // pred_check_branch
        %882 = sbr.rel (%p880) target = $region51
      $region50: #{cnn_forward.2} parent=46 // pred_region
        %p883 = scmp.lt.s32.totalorder %s15, 1
        %s884 = scalar_select %p883, %s15, 1
        %s885 = smul.addr %s884, 128
        %s886 = smul.addr %s885, 4
        %s887 = scalar_lea.vmem %s3, %s886
      $region51: #{cnn_forward.2} parent=46 // pred_fallthru
        _
    $region47: #{cnn_forward.2} parent=5 // pred_fallthru
      _
  $region6: #{cnn_forward.2} parent=0 // loop_footer
    %s13 = sadd.s32 1, %s9
  $region7: #{cnn_forward.2} parent=0 // loop_footer_branch
    %8 = sbr.rel target = $region3
  $region8: #{cnn_forward.2} parent=0 // loop_exit
    _

// kernel: cnn_forward.3
$region0: #{cnn_forward.3}
  #allocation0 [shape = 'u32[]', space=smem, size = 0x4, offset = 0x4, fixed_abs, tag = 'smem constant byte address 0x4 - core index']
  #allocation1 [shape = 'u32[72,128]{1,0:T(1,128)}', space=vmem, size = 0x9000, scoped, tag = 'internal scratch']
  %s0 = inlined_call_operand.vmem [shape: bf16[2,4,288,1024], index: 0, kind: input, shape index: {}]
  %s1 = inlined_call_operand.vmem [shape: bf16[64,288], index: 1, kind: input, shape index: {}]
  %s2 = inlined_call_operand.vmem [shape: f32[64,1], index: 2, kind: input, shape index: {}]
  %s3 = inlined_call_operand.vmem [shape: f32[3,64,1024], index: 3, kind: input, shape index: {}]
  %s4 = inlined_call_operand.vmem [shape: f32[3,1], index: 4, kind: input, shape index: {}]
  %s5 = inlined_call_operand.vmem [shape: f32[2,3,1], index: 5, kind: output, shape index: {}]
  %s6 = sld [smem:[#allocation0]]
  $region60: #{cnn_forward.3} parent=0
    _
  %s8 = ssub.s32 1, %s6
  %s9 = scalar_select 0, %s8, %s6
  loop: start=0, step=1, limit=4
  $region2: #{cnn_forward.3} parent=0 // loop_pre_header
    _
  $region3: #{cnn_forward.3} parent=0 // loop_header
    %s11 = sphi 0, %s15
    %p12 = scmp.ge.s32.totalorder %s11, 4
    %s21 = sphi 0, %s23
    %s24 = sphi 0, %s21
    %s25 = sphi 0, %s24
    %s41 = sphi 0, %s25
    %s45 = sphi 0, %s45
    %s47 = sphi 0, %s45
    %s48 = sphi 0, %s47
    %s62 = sphi 0, %s48
    %s66 = sphi 0, %s66
    %s68 = sphi 0, %s66
    %s69 = sphi 0, %s68
    %s83 = sphi 0, %s69
    %s87 = sphi 0, %s87
    %s89 = sphi 0, %s87
    %s90 = sphi 0, %s89
    %s104 = sphi 0, %s90
    %s108 = sphi 0, %s108
    %s110 = sphi 0, %s108
    %s111 = sphi 0, %s110
    %s125 = sphi 0, %s111
    %s131 = sphi 0, %s133
    %s134 = sphi 0, %s131
    %s135 = sphi 0, %s134
    %s151 = sphi 0, %s135
  $region4: #{cnn_forward.3} parent=0 // loop_header_branch
    %14 = sbr.rel (%p12) target = $region8
  $region5: #{cnn_forward.3} parent=0 // loop_body
    %s16 = ssub.s32 %s11, 1
    %s17 = ssub.s32 %s11, 2
    %s18 = sadd.s32 %s11, 1
    %s19 = ssub.s32 %s11, %s18
    %p20 = scmp.eq.s32.totalorder %s19, 0
    %s22 = sadd.s32 %s21, 1
    %s23 = scalar_select %p20, %s21, %s22
    %p26 = pneg %p20
    %p27 = scmp.eq.s32.totalorder %s11, 1
    %p28 = por %p26, %p27
    %p29 = scmp.ne.s32.totalorder %s21, %s24
    %p30 = scmp.eq.s32.totalorder %s11, 0
    %p31 = por %p29, %p30
    %p32 = scmp.ne.s32.totalorder %s21, %s24
    %p33 = scmp.eq.s32.totalorder %s16, 1
    %p34 = por %p32, %p33
    %p35 = scmp.ne.s32.totalorder %s24, %s25
    %p36 = scmp.eq.s32.totalorder %s16, 0
    %p37 = por %p35, %p36
    %p38 = scmp.ne.s32.totalorder %s24, %s25
    %p39 = scmp.eq.s32.totalorder %s17, 1
    %p40 = por %p38, %p39
    %p42 = scmp.ne.s32.totalorder %s25, %s41
    %p43 = scmp.eq.s32.totalorder %s17, 0
    %p44 = por %p42, %p43
    %s46 = sadd.s32 %s45, 1
    %p49 = scmp.eq.s32.totalorder %s11, 1
    %p50 = scmp.ne.s32.totalorder %s45, %s47
    %p51 = scmp.eq.s32.totalorder %s11, 0
    %p52 = por %p50, %p51
    %p53 = scmp.ne.s32.totalorder %s45, %s47
    %p54 = scmp.eq.s32.totalorder %s16, 1
    %p55 = por %p53, %p54
    %p56 = scmp.ne.s32.totalorder %s47, %s48
    %p57 = scmp.eq.s32.totalorder %s16, 0
    %p58 = por %p56, %p57
    %p59 = scmp.ne.s32.totalorder %s47, %s48
    %p60 = scmp.eq.s32.totalorder %s17, 1
    %p61 = por %p59, %p60
    %p63 = scmp.ne.s32.totalorder %s48, %s62
    %p64 = scmp.eq.s32.totalorder %s17, 0
    %p65 = por %p63, %p64
    %s67 = sadd.s32 %s66, 1
    %p70 = scmp.eq.s32.totalorder %s11, 1
    %p71 = scmp.ne.s32.totalorder %s66, %s68
    %p72 = scmp.eq.s32.totalorder %s11, 0
    %p73 = por %p71, %p72
    %p74 = scmp.ne.s32.totalorder %s66, %s68
    %p75 = scmp.eq.s32.totalorder %s16, 1
    %p76 = por %p74, %p75
    %p77 = scmp.ne.s32.totalorder %s68, %s69
    %p78 = scmp.eq.s32.totalorder %s16, 0
    %p79 = por %p77, %p78
    %p80 = scmp.ne.s32.totalorder %s68, %s69
    %p81 = scmp.eq.s32.totalorder %s17, 1
    %p82 = por %p80, %p81
    %p84 = scmp.ne.s32.totalorder %s69, %s83
    %p85 = scmp.eq.s32.totalorder %s17, 0
    %p86 = por %p84, %p85
    %s88 = sadd.s32 %s87, 1
    %p91 = scmp.eq.s32.totalorder %s11, 1
    %p92 = scmp.ne.s32.totalorder %s87, %s89
    %p93 = scmp.eq.s32.totalorder %s11, 0
    %p94 = por %p92, %p93
    %p95 = scmp.ne.s32.totalorder %s87, %s89
    %p96 = scmp.eq.s32.totalorder %s16, 1
    %p97 = por %p95, %p96
    %p98 = scmp.ne.s32.totalorder %s89, %s90
    %p99 = scmp.eq.s32.totalorder %s16, 0
    %p100 = por %p98, %p99
    %p101 = scmp.ne.s32.totalorder %s89, %s90
    %p102 = scmp.eq.s32.totalorder %s17, 1
    %p103 = por %p101, %p102
    %p105 = scmp.ne.s32.totalorder %s90, %s104
    %p106 = scmp.eq.s32.totalorder %s17, 0
    %p107 = por %p105, %p106
    %s109 = sadd.s32 %s108, 1
    %p112 = scmp.eq.s32.totalorder %s11, 1
    %p113 = scmp.ne.s32.totalorder %s108, %s110
    %p114 = scmp.eq.s32.totalorder %s11, 0
    %p115 = por %p113, %p114
    %p116 = scmp.ne.s32.totalorder %s108, %s110
    %p117 = scmp.eq.s32.totalorder %s16, 1
    %p118 = por %p116, %p117
    %p119 = scmp.ne.s32.totalorder %s110, %s111
    %p120 = scmp.eq.s32.totalorder %s16, 0
    %p121 = por %p119, %p120
    %p122 = scmp.ne.s32.totalorder %s110, %s111
    %p123 = scmp.eq.s32.totalorder %s17, 1
    %p124 = por %p122, %p123
    %p126 = scmp.ne.s32.totalorder %s111, %s125
    %p127 = scmp.eq.s32.totalorder %s17, 0
    %p128 = por %p126, %p127
    %s129 = ssub.s32 %s11, %s18
    %p130 = scmp.eq.s32.totalorder %s129, 0
    %s132 = sadd.s32 %s131, 1
    %s133 = scalar_select %p130, %s131, %s132
    %p136 = pneg %p130
    %p137 = scmp.eq.s32.totalorder %s11, 1
    %p138 = por %p136, %p137
    %p139 = scmp.ne.s32.totalorder %s131, %s134
    %p140 = scmp.eq.s32.totalorder %s11, 0
    %p141 = por %p139, %p140
    %p142 = scmp.ne.s32.totalorder %s131, %s134
    %p143 = scmp.eq.s32.totalorder %s16, 1
    %p144 = por %p142, %p143
    %p145 = scmp.ne.s32.totalorder %s134, %s135
    %p146 = scmp.eq.s32.totalorder %s16, 0
    %p147 = por %p145, %p146
    %p148 = scmp.ne.s32.totalorder %s134, %s135
    %p149 = scmp.eq.s32.totalorder %s17, 1
    %p150 = por %p148, %p149
    %p152 = scmp.ne.s32.totalorder %s135, %s151
    %p153 = scmp.eq.s32.totalorder %s17, 0
    %p154 = por %p152, %p153
    %p155 = scmp.le.s32.totalorder 1, %s11
    %p156 = scmp.lt.s32.totalorder %s11, 3
    %p157 = pnand %p155, %p156
    %p158 = pneg %p157
    // Predicated region
    $region9: #{cnn_forward.3} parent=5 // pred_check
      _
    $region10: #{cnn_forward.3} parent=5 // pred_check_branch
      %160 = sbr.rel (%p157) target = $region12
    $region11: #{cnn_forward.3} parent=5 // pred_region
      %s161 = ssub.s32 %s11, 1
      // Predicated region
      $region13: #{cnn_forward.3} parent=11 // pred_check
        %p162 = pneg %p58
      $region14: #{cnn_forward.3} parent=11 // pred_check_branch
        %164 = sbr.rel (%p162) target = $region16
      $region15: #{cnn_forward.3} parent=11 // pred_region
        _
      $region16: #{cnn_forward.3} parent=11 // pred_fallthru
        _
      // Predicated region
      $region17: #{cnn_forward.3} parent=11 // pred_check
        %p165 = pneg %p79
      $region18: #{cnn_forward.3} parent=11 // pred_check_branch
        %167 = sbr.rel (%p165) target = $region20
      $region19: #{cnn_forward.3} parent=11 // pred_region
        _
      $region20: #{cnn_forward.3} parent=11 // pred_fallthru
        _
      // Predicated region
      $region21: #{cnn_forward.3} parent=11 // pred_check
        %p168 = pneg %p100
      $region22: #{cnn_forward.3} parent=11 // pred_check_branch
        %170 = sbr.rel (%p168) target = $region24
      $region23: #{cnn_forward.3} parent=11 // pred_region
        _
      $region24: #{cnn_forward.3} parent=11 // pred_fallthru
        _
      // Predicated region
      $region25: #{cnn_forward.3} parent=11 // pred_check
        %p171 = pneg %p121
      $region26: #{cnn_forward.3} parent=11 // pred_check_branch
        %173 = sbr.rel (%p171) target = $region28
      $region27: #{cnn_forward.3} parent=11 // pred_region
        _
      $region28: #{cnn_forward.3} parent=11 // pred_fallthru
        _
    $region12: #{cnn_forward.3} parent=5 // pred_fallthru
      _
    %p174 = scmp.lt.s32.totalorder %s11, 2
    // Predicated region
    $region29: #{cnn_forward.3} parent=5 // pred_check
      %p175 = pneg %p174
    $region30: #{cnn_forward.3} parent=5 // pred_check_branch
      %177 = sbr.rel (%p175) target = $region32
    $region31: #{cnn_forward.3} parent=5 // pred_region
      // Predicated region
      $region33: #{cnn_forward.3} parent=31 // pred_check
        %p178 = pneg %p31
      $region34: #{cnn_forward.3} parent=31 // pred_check_branch
        %180 = sbr.rel (%p178) target = $region36
      $region35: #{cnn_forward.3} parent=31 // pred_region
        %p181 = scmp.lt.s32.totalorder %s11, 1
        %s182 = scalar_select %p181, %s11, 1
        %s183 = smul.addr %s182, 1152
        %s184 = smul.addr %s183, 4
        %s185 = scalar_lea.vmem %s0, %s184
      $region36: #{cnn_forward.3} parent=31 // pred_fallthru
        _
    $region32: #{cnn_forward.3} parent=5 // pred_fallthru
      _
    %p186 = scmp.le.s32.totalorder 1, %s11
    %p187 = scmp.lt.s32.totalorder %s11, 3
    %p188 = pnand %p186, %p187
    %p189 = pneg %p188
    // Predicated region
    $region37: #{cnn_forward.3} parent=5 // pred_check
      _
    $region38: #{cnn_forward.3} parent=5 // pred_check_branch
      %191 = sbr.rel (%p188) target = $region40
    $region39: #{cnn_forward.3} parent=5 // pred_region
      %s192 = ssub.s32 %s11, 1
      %p193 = scmp.lt.s32.totalorder %s16, 1
      %s194 = scalar_select %p193, %s16, 1
      %s195 = smul.addr %s194, 1152
      %s196 = smul.addr %s195, 4
      %s197 = scalar_lea.vmem %s0, %s196
      %p198 = pneg %p37
      %p199 = pneg %p34
      %p200 = pneg %p58
      %p201 = pneg %p55
      %p202 = pneg %p79
      %p203 = pneg %p76
      %p204 = pneg %p100
      %p205 = pneg %p97
      %p206 = pneg %p121
      %p207 = pneg %p118
      %p208 = pneg %p147
      %p209 = pneg %p144
      %p210 = scmp.lt.s32.totalorder %s16, 1
      %s211 = scalar_select %p210, %s16, 1
      %s212 = smul.addr %s211, 4
      %s213 = scalar_lea.vmem %s5, %s212
      %p214 = scmp.lt.s32.totalorder %s16, 1
      %s215 = scalar_select %p214, %s16, 1
      %s216 = smul.addr %s215, 1152
      %s217 = smul.addr %s216, 4
      %s218 = scalar_lea.vmem %s0, %s217
      %p219 = scmp.lt.s32.totalorder %s16, 1
      %s220 = scalar_select %p219, %s16, 1
      %s221 = smul.addr %s220, 4
      %s222 = scalar_lea.vmem %s5, %s221
      loop: start=0, step=1, limit=8
      $region41: #{cnn_forward.3} parent=39 // loop_pre_header
        _
      $region42: #{cnn_forward.3} parent=39 // loop_header
        %s225 = sphi 0, %s229
        %p226 = scmp.ge.s32.totalorder %s225, 8
        %v230 = vphi 0.0, %v1445
      $region43: #{cnn_forward.3} parent=39 // loop_header_branch
        %228 = sbr.rel (%p226) target = $region47
      $region44: #{cnn_forward.3} parent=39 // loop_body
        %s231 = smul.u32 %s225, 128
        %v232 = vld [vmem:[%s1] sm:$0xff]
        %v233 = vld [vmem:[%s1 + $0x8] sm:$0xf]
        %v234 = vld [vmem:[%s1 + $0xc] sm:$0xff]
        %v235 = vld [vmem:[%s1 + $0x14] sm:$0xf]
        %v236 = vld [vmem:[%s1 + $0x18] sm:$0xff]
        %v237 = vld [vmem:[%s1 + $0x20] sm:$0xf]
        %v238 = vld [vmem:[%s1 + $0x24] sm:$0xff]
        %v239 = vld [vmem:[%s1 + $0x2c] sm:$0xf]
        %v240 = vld [vmem:[%s1 + $0x30] sm:$0xff]
        %v241 = vld [vmem:[%s1 + $0x38] sm:$0xf]
        %v242 = vld [vmem:[%s1 + $0x3c] sm:$0xff]
        %v243 = vld [vmem:[%s1 + $0x44] sm:$0xf]
        %v244 = vld [vmem:[%s1 + $0x48] sm:$0xff]
        %v245 = vld [vmem:[%s1 + $0x50] sm:$0xf]
        %v246 = vld [vmem:[%s1 + $0x54] sm:$0xff]
        %v247 = vld [vmem:[%s1 + $0x5c] sm:$0xf]
        %s248 = sshra.s32 %s231, 7
        %s249 = sand.u32 %s231, 127
        %s250 = smul.addr %s248, 4
        %s251 = scalar_lea.vmem %s218, %s250
        %v252 = vld [vmem:[%s251] sm:$0xf]
        %v253 = vld [vmem:[%s251 + $0x20] sm:$0xf]
        %v254 = vld [vmem:[%s251 + $0x40] sm:$0xf]
        %v255 = vld [vmem:[%s251 + $0x60] sm:$0xf]
        %v256 = vld [vmem:[%s251 + $0x80] sm:$0xf]
        %v257 = vld [vmem:[%s251 + $0xa0] sm:$0xf]
        %v258 = vld [vmem:[%s251 + $0xc0] sm:$0xf]
        %v259 = vld [vmem:[%s251 + $0xe0] sm:$0xf]
        %v260 = vld [vmem:[%s251 + $0x100] sm:$0xf]
        %v261 = vld [vmem:[%s251 + $0x120] sm:$0xf]
        %v262 = vld [vmem:[%s251 + $0x140] sm:$0xf]
        %v263 = vld [vmem:[%s251 + $0x160] sm:$0xf]
        %v264 = vld [vmem:[%s251 + $0x180] sm:$0xf]
        %v265 = vld [vmem:[%s251 + $0x1a0] sm:$0xf]
        %v266 = vld [vmem:[%s251 + $0x1c0] sm:$0xf]
        %v267 = vld [vmem:[%s251 + $0x1e0] sm:$0xf]
        %v268 = vld [vmem:[%s251 + $0x200] sm:$0xf]
        %v269 = vld [vmem:[%s251 + $0x220] sm:$0xf]
        %v270 = vld [vmem:[%s251 + $0x240] sm:$0xf]
        %v271 = vld [vmem:[%s251 + $0x260] sm:$0xf]
        %v272 = vld [vmem:[%s251 + $0x280] sm:$0xf]
        %v273 = vld [vmem:[%s251 + $0x2a0] sm:$0xf]
        %v274 = vld [vmem:[%s251 + $0x2c0] sm:$0xf]
        %v275 = vld [vmem:[%s251 + $0x2e0] sm:$0xf]
        %v276 = vld [vmem:[%s251 + $0x300] sm:$0xf]
        %v277 = vld [vmem:[%s251 + $0x320] sm:$0xf]
        %v278 = vld [vmem:[%s251 + $0x340] sm:$0xf]
        %v279 = vld [vmem:[%s251 + $0x360] sm:$0xf]
        %v280 = vld [vmem:[%s251 + $0x380] sm:$0xf]
        %v281 = vld [vmem:[%s251 + $0x3a0] sm:$0xf]
        %v282 = vld [vmem:[%s251 + $0x3c0] sm:$0xf]
        %v283 = vld [vmem:[%s251 + $0x3e0] sm:$0xf]
        %v284 = vld [vmem:[%s251 + $0x400] sm:$0xf]
        %v285 = vld [vmem:[%s251 + $0x420] sm:$0xf]
        %v286 = vld [vmem:[%s251 + $0x440] sm:$0xf]
        %v287 = vld [vmem:[%s251 + $0x460] sm:$0xf]
        %v304 = vunpack.c.l.b16 %v232
        %v305 = vunpack.c.h.b16 %v232
        %v306 = vunpack.c.l.b16 %v233
        %v307 = vunpack.c.l.b16 %v234
        %v308 = vunpack.c.h.b16 %v234
        %v309 = vunpack.c.l.b16 %v235
        %v310 = vunpack.c.l.b16 %v236
        %v311 = vunpack.c.h.b16 %v236
        %v312 = vunpack.c.l.b16 %v237
        %v313 = vunpack.c.l.b16 %v238
        %v314 = vunpack.c.h.b16 %v238
        %v315 = vunpack.c.l.b16 %v239
        %v316 = vunpack.c.l.b16 %v240
        %v317 = vunpack.c.h.b16 %v240
        %v318 = vunpack.c.l.b16 %v241
        %v319 = vunpack.c.l.b16 %v242
        %v320 = vunpack.c.h.b16 %v242
        %v321 = vunpack.c.l.b16 %v243
        %v322 = vunpack.c.l.b16 %v244
        %v323 = vunpack.c.h.b16 %v244
        %v324 = vunpack.c.l.b16 %v245
        %v325 = vunpack.c.l.b16 %v246
        %v326 = vunpack.c.h.b16 %v246
        %v327 = vunpack.c.l.b16 %v247
        %v328 = vpack.c.b16 %v307, %v304
        %v329 = vpack.c.b16 %v308, %v305
        %v330 = vpack.c.b16 %v309, %v306
        %v331 = vpack.c.b16 %v313, %v310
        %v332 = vpack.c.b16 %v314, %v311
        %v333 = vpack.c.b16 %v315, %v312
        %v334 = vpack.c.b16 %v319, %v316
        %v335 = vpack.c.b16 %v320, %v317
        %v336 = vpack.c.b16 %v321, %v318
        %v337 = vpack.c.b16 %v325, %v322
        %v338 = vpack.c.b16 %v326, %v323
        %v339 = vpack.c.b16 %v327, %v324
        %v384 = vunpack.c.l.b16 %v252
        %v385 = vunpack.c.l.b16 %v253
        %v386 = vunpack.c.l.b16 %v254
        %v387 = vunpack.c.l.b16 %v255
        %v388 = vunpack.c.l.b16 %v256
        %v389 = vunpack.c.l.b16 %v257
        %v390 = vunpack.c.l.b16 %v258
        %v391 = vunpack.c.l.b16 %v259
        %v392 = vunpack.c.l.b16 %v260
        %v393 = vunpack.c.l.b16 %v261
        %v394 = vunpack.c.l.b16 %v262
        %v395 = vunpack.c.l.b16 %v263
        %v396 = vunpack.c.l.b16 %v264
        %v397 = vunpack.c.l.b16 %v265
        %v398 = vunpack.c.l.b16 %v266
        %v399 = vunpack.c.l.b16 %v267
        %v400 = vunpack.c.l.b16 %v268
        %v401 = vunpack.c.l.b16 %v269
        %v402 = vunpack.c.l.b16 %v270
        %v403 = vunpack.c.l.b16 %v271
        %v404 = vunpack.c.l.b16 %v272
        %v405 = vunpack.c.l.b16 %v273
        %v406 = vunpack.c.l.b16 %v274
        %v407 = vunpack.c.l.b16 %v275
        %v408 = vunpack.c.l.b16 %v276
        %v409 = vunpack.c.l.b16 %v277
        %v410 = vunpack.c.l.b16 %v278
        %v411 = vunpack.c.l.b16 %v279
        %v412 = vunpack.c.l.b16 %v280
        %v413 = vunpack.c.l.b16 %v281
        %v414 = vunpack.c.l.b16 %v282
        %v415 = vunpack.c.l.b16 %v283
        %v416 = vunpack.c.l.b16 %v284
        %v417 = vunpack.c.l.b16 %v285
        %v418 = vunpack.c.l.b16 %v286
        %v419 = vunpack.c.l.b16 %v287
        %v420 = vpack.c.b16 %v385, %v384
        %v421 = vpack.c.b16 %v387, %v386
        %v422 = vpack.c.b16 %v389, %v388
        %v423 = vpack.c.b16 %v391, %v390
        %v424 = vpack.c.b16 %v393, %v392
        %v425 = vpack.c.b16 %v395, %v394
        %v426 = vpack.c.b16 %v397, %v396
        %v427 = vpack.c.b16 %v399, %v398
        %v428 = vpack.c.b16 %v401, %v400
        %v429 = vpack.c.b16 %v403, %v402
        %v430 = vpack.c.b16 %v405, %v404
        %v431 = vpack.c.b16 %v407, %v406
        %v432 = vpack.c.b16 %v409, %v408
        %v433 = vpack.c.b16 %v411, %v410
        %v434 = vpack.c.b16 %v413, %v412
        %v435 = vpack.c.b16 %v415, %v414
        %v436 = vpack.c.b16 %v417, %v416
        %v437 = vpack.c.b16 %v419, %v418
        %vm456 = vcmask 261120
        %v458 = vsel %vm456, %v330, 0
        %v461 = vsel %vm456, %v333, 0
        %v464 = vsel %vm456, %v336, 0
        %v467 = vsel %vm456, %v339, 0
        %469 = vmatpush.bf16.msra.mxu0 %v427
        %470 = vmatpush.bf16.msra.mxu0 %v426
        %471 = vmatpush.bf16.msra.mxu0 %v425
        %472 = vmatpush.bf16.msra.mxu0 %v424
        %473 = vmatpush.bf16.msra.mxu0 %v423
        %474 = vmatpush.bf16.msra.mxu0 %v422
        %475 = vmatpush.bf16.msra.mxu0 %v421
        %476 = vmatpush.bf16.msra.mxu0 %v420
        %477 = vmatmul.bf16.gmra.mxu0 %v328
        %v478 = vpop.f32.mrf.mxu0
        %v479 = vadd.f32 0.0, %v478
        %v480 = vpop.f32.mrf.mxu0
        %v481 = vadd.f32 0.0, %v480
        %482 = vmatmul.bf16.gmra.mxu0 %v331
        %v483 = vpop.f32.mrf.mxu0
        %v484 = vadd.f32 0.0, %v483
        %v485 = vpop.f32.mrf.mxu0
        %v486 = vadd.f32 0.0, %v485
        %487 = vmatmul.bf16.gmra.mxu0 %v334
        %v488 = vpop.f32.mrf.mxu0
        %v489 = vadd.f32 0.0, %v488
        %v490 = vpop.f32.mrf.mxu0
        %v491 = vadd.f32 0.0, %v490
        %492 = vmatmul.bf16.gmra.mxu0 %v337
        %v493 = vpop.f32.mrf.mxu0
        %v494 = vadd.f32 0.0, %v493
        %v495 = vpop.f32.mrf.mxu0
        %v496 = vadd.f32 0.0, %v495
        %497 = vdwg.mxu0
        %498 = vmatpush.bf16.msra.mxu0 %v435
        %499 = vmatpush.bf16.msra.mxu0 %v434
        %500 = vmatpush.bf16.msra.mxu0 %v433
        %501 = vmatpush.bf16.msra.mxu0 %v432
        %502 = vmatpush.bf16.msra.mxu0 %v431
        %503 = vmatpush.bf16.msra.mxu0 %v430
        %504 = vmatpush.bf16.msra.mxu0 %v429
        %505 = vmatpush.bf16.msra.mxu0 %v428
        %506 = vmatmul.bf16.gmra.mxu0 %v329
        %v507 = vpop.f32.mrf.mxu0
        %v508 = vadd.f32 %v479, %v507
        %v509 = vpop.f32.mrf.mxu0
        %v510 = vadd.f32 %v481, %v509
        %511 = vmatmul.bf16.gmra.mxu0 %v332
        %v512 = vpop.f32.mrf.mxu0
        %v513 = vadd.f32 %v484, %v512
        %v514 = vpop.f32.mrf.mxu0
        %v515 = vadd.f32 %v486, %v514
        %516 = vmatmul.bf16.gmra.mxu0 %v335
        %v517 = vpop.f32.mrf.mxu0
        %v518 = vadd.f32 %v489, %v517
        %v519 = vpop.f32.mrf.mxu0
        %v520 = vadd.f32 %v491, %v519
        %521 = vmatmul.bf16.gmra.mxu0 %v338
        %v522 = vpop.f32.mrf.mxu0
        %v523 = vadd.f32 %v494, %v522
        %v524 = vpop.f32.mrf.mxu0
        %v525 = vadd.f32 %v496, %v524
        %526 = vdwg.mxu0
        %527 = vmatpush.bf16.msra.mxu0 0
        %528 = vmatpush.bf16.msra.mxu0 0
        %529 = vmatpush.bf16.msra.mxu0 0
        %530 = vmatpush.bf16.msra.mxu0 0
        %531 = vmatpush.bf16.msra.mxu0 0
        %532 = vmatpush.bf16.msra.mxu0 0
        %533 = vmatpush.bf16.msra.mxu0 %v437
        %534 = vmatpush.bf16.msra.mxu0 %v436
        %535 = vmatmul.bf16.gmra.mxu0 %v458
        %v536 = vpop.f32.mrf.mxu0
        %v537 = vadd.f32 %v508, %v536
        %v538 = vpop.f32.mrf.mxu0
        %v539 = vadd.f32 %v510, %v538
        %540 = vmatmul.bf16.gmra.mxu0 %v461
        %v541 = vpop.f32.mrf.mxu0
        %v542 = vadd.f32 %v513, %v541
        %v543 = vpop.f32.mrf.mxu0
        %v544 = vadd.f32 %v515, %v543
        %545 = vmatmul.bf16.gmra.mxu0 %v464
        %v546 = vpop.f32.mrf.mxu0
        %v547 = vadd.f32 %v518, %v546
        %v548 = vpop.f32.mrf.mxu0
        %v549 = vadd.f32 %v520, %v548
        %550 = vmatmul.bf16.gmra.mxu0 %v467
        %v551 = vpop.f32.mrf.mxu0
        %v552 = vadd.f32 %v523, %v551
        %v553 = vpop.f32.mrf.mxu0
        %v554 = vadd.f32 %v525, %v553
        %555 = vdwg.mxu0
        %s556 = sadd.s32 %s248, 288
        %s557 = smul.addr %s556, 4
        %s558 = scalar_lea.vmem %s218, %s557
        %v559 = vld [vmem:[%s558] sm:$0xf]
        %v560 = vld [vmem:[%s558 + $0x20] sm:$0xf]
        %v561 = vld [vmem:[%s558 + $0x40] sm:$0xf]
        %v562 = vld [vmem:[%s558 + $0x60] sm:$0xf]
        %v563 = vld [vmem:[%s558 + $0x80] sm:$0xf]
        %v564 = vld [vmem:[%s558 + $0xa0] sm:$0xf]
        %v565 = vld [vmem:[%s558 + $0xc0] sm:$0xf]
        %v566 = vld [vmem:[%s558 + $0xe0] sm:$0xf]
        %v567 = vld [vmem:[%s558 + $0x100] sm:$0xf]
        %v568 = vld [vmem:[%s558 + $0x120] sm:$0xf]
        %v569 = vld [vmem:[%s558 + $0x140] sm:$0xf]
        %v570 = vld [vmem:[%s558 + $0x160] sm:$0xf]
        %v571 = vld [vmem:[%s558 + $0x180] sm:$0xf]
        %v572 = vld [vmem:[%s558 + $0x1a0] sm:$0xf]
        %v573 = vld [vmem:[%s558 + $0x1c0] sm:$0xf]
        %v574 = vld [vmem:[%s558 + $0x1e0] sm:$0xf]
        %v575 = vld [vmem:[%s558 + $0x200] sm:$0xf]
        %v576 = vld [vmem:[%s558 + $0x220] sm:$0xf]
        %v577 = vld [vmem:[%s558 + $0x240] sm:$0xf]
        %v578 = vld [vmem:[%s558 + $0x260] sm:$0xf]
        %v579 = vld [vmem:[%s558 + $0x280] sm:$0xf]
        %v580 = vld [vmem:[%s558 + $0x2a0] sm:$0xf]
        %v581 = vld [vmem:[%s558 + $0x2c0] sm:$0xf]
        %v582 = vld [vmem:[%s558 + $0x2e0] sm:$0xf]
        %v583 = vld [vmem:[%s558 + $0x300] sm:$0xf]
        %v584 = vld [vmem:[%s558 + $0x320] sm:$0xf]
        %v585 = vld [vmem:[%s558 + $0x340] sm:$0xf]
        %v586 = vld [vmem:[%s558 + $0x360] sm:$0xf]
        %v587 = vld [vmem:[%s558 + $0x380] sm:$0xf]
        %v588 = vld [vmem:[%s558 + $0x3a0] sm:$0xf]
        %v589 = vld [vmem:[%s558 + $0x3c0] sm:$0xf]
        %v590 = vld [vmem:[%s558 + $0x3e0] sm:$0xf]
        %v591 = vld [vmem:[%s558 + $0x400] sm:$0xf]
        %v592 = vld [vmem:[%s558 + $0x420] sm:$0xf]
        %v593 = vld [vmem:[%s558 + $0x440] sm:$0xf]
        %v594 = vld [vmem:[%s558 + $0x460] sm:$0xf]
        %v631 = vunpack.c.l.b16 %v559
        %v632 = vunpack.c.l.b16 %v560
        %v633 = vunpack.c.l.b16 %v561
        %v634 = vunpack.c.l.b16 %v562
        %v635 = vunpack.c.l.b16 %v563
        %v636 = vunpack.c.l.b16 %v564
        %v637 = vunpack.c.l.b16 %v565
        %v638 = vunpack.c.l.b16 %v566
        %v639 = vunpack.c.l.b16 %v567
        %v640 = vunpack.c.l.b16 %v568
        %v641 = vunpack.c.l.b16 %v569
        %v642 = vunpack.c.l.b16 %v570
        %v643 = vunpack.c.l.b16 %v571
        %v644 = vunpack.c.l.b16 %v572
        %v645 = vunpack.c.l.b16 %v573
        %v646 = vunpack.c.l.b16 %v574
        %v647 = vunpack.c.l.b16 %v575
        %v648 = vunpack.c.l.b16 %v576
        %v649 = vunpack.c.l.b16 %v577
        %v650 = vunpack.c.l.b16 %v578
        %v651 = vunpack.c.l.b16 %v579
        %v652 = vunpack.c.l.b16 %v580
        %v653 = vunpack.c.l.b16 %v581
        %v654 = vunpack.c.l.b16 %v582
        %v655 = vunpack.c.l.b16 %v583
        %v656 = vunpack.c.l.b16 %v584
        %v657 = vunpack.c.l.b16 %v585
        %v658 = vunpack.c.l.b16 %v586
        %v659 = vunpack.c.l.b16 %v587
        %v660 = vunpack.c.l.b16 %v588
        %v661 = vunpack.c.l.b16 %v589
        %v662 = vunpack.c.l.b16 %v590
        %v663 = vunpack.c.l.b16 %v591
        %v664 = vunpack.c.l.b16 %v592
        %v665 = vunpack.c.l.b16 %v593
        %v666 = vunpack.c.l.b16 %v594
        %v667 = vpack.c.b16 %v632, %v631
        %v668 = vpack.c.b16 %v634, %v633
        %v669 = vpack.c.b16 %v636, %v635
        %v670 = vpack.c.b16 %v638, %v637
        %v671 = vpack.c.b16 %v640, %v639
        %v672 = vpack.c.b16 %v642, %v641
        %v673 = vpack.c.b16 %v644, %v643
        %v674 = vpack.c.b16 %v646, %v645
        %v675 = vpack.c.b16 %v648, %v647
        %v676 = vpack.c.b16 %v650, %v649
        %v677 = vpack.c.b16 %v652, %v651
        %v678 = vpack.c.b16 %v654, %v653
        %v679 = vpack.c.b16 %v656, %v655
        %v680 = vpack.c.b16 %v658, %v657
        %v681 = vpack.c.b16 %v660, %v659
        %v682 = vpack.c.b16 %v662, %v661
        %v683 = vpack.c.b16 %v664, %v663
        %v684 = vpack.c.b16 %v666, %v665
        %703 = vmatpush.bf16.msra.mxu0 %v674
        %704 = vmatpush.bf16.msra.mxu0 %v673
        %705 = vmatpush.bf16.msra.mxu0 %v672
        %706 = vmatpush.bf16.msra.mxu0 %v671
        %707 = vmatpush.bf16.msra.mxu0 %v670
        %708 = vmatpush.bf16.msra.mxu0 %v669
        %709 = vmatpush.bf16.msra.mxu0 %v668
        %710 = vmatpush.bf16.msra.mxu0 %v667
        %711 = vmatmul.bf16.gmra.mxu0 %v328
        %v712 = vpop.f32.mrf.mxu0
        %v713 = vadd.f32 0.0, %v712
        %v714 = vpop.f32.mrf.mxu0
        %v715 = vadd.f32 0.0, %v714
        %716 = vmatmul.bf16.gmra.mxu0 %v331
        %v717 = vpop.f32.mrf.mxu0
        %v718 = vadd.f32 0.0, %v717
        %v719 = vpop.f32.mrf.mxu0
        %v720 = vadd.f32 0.0, %v719
        %721 = vmatmul.bf16.gmra.mxu0 %v334
        %v722 = vpop.f32.mrf.mxu0
        %v723 = vadd.f32 0.0, %v722
        %v724 = vpop.f32.mrf.mxu0
        %v725 = vadd.f32 0.0, %v724
        %726 = vmatmul.bf16.gmra.mxu0 %v337
        %v727 = vpop.f32.mrf.mxu0
        %v728 = vadd.f32 0.0, %v727
        %v729 = vpop.f32.mrf.mxu0
        %v730 = vadd.f32 0.0, %v729
        %731 = vdwg.mxu0
        %732 = vmatpush.bf16.msra.mxu0 %v682
        %733 = vmatpush.bf16.msra.mxu0 %v681
        %734 = vmatpush.bf16.msra.mxu0 %v680
        %735 = vmatpush.bf16.msra.mxu0 %v679
        %736 = vmatpush.bf16.msra.mxu0 %v678
        %737 = vmatpush.bf16.msra.mxu0 %v677
        %738 = vmatpush.bf16.msra.mxu0 %v676
        %739 = vmatpush.bf16.msra.mxu0 %v675
        %740 = vmatmul.bf16.gmra.mxu0 %v329
        %v741 = vpop.f32.mrf.mxu0
        %v742 = vadd.f32 %v713, %v741
        %v743 = vpop.f32.mrf.mxu0
        %v744 = vadd.f32 %v715, %v743
        %745 = vmatmul.bf16.gmra.mxu0 %v332
        %v746 = vpop.f32.mrf.mxu0
        %v747 = vadd.f32 %v718, %v746
        %v748 = vpop.f32.mrf.mxu0
        %v749 = vadd.f32 %v720, %v748
        %750 = vmatmul.bf16.gmra.mxu0 %v335
        %v751 = vpop.f32.mrf.mxu0
        %v752 = vadd.f32 %v723, %v751
        %v753 = vpop.f32.mrf.mxu0
        %v754 = vadd.f32 %v725, %v753
        %755 = vmatmul.bf16.gmra.mxu0 %v338
        %v756 = vpop.f32.mrf.mxu0
        %v757 = vadd.f32 %v728, %v756
        %v758 = vpop.f32.mrf.mxu0
        %v759 = vadd.f32 %v730, %v758
        %760 = vdwg.mxu0
        %761 = vmatpush.bf16.msra.mxu0 0
        %762 = vmatpush.bf16.msra.mxu0 0
        %763 = vmatpush.bf16.msra.mxu0 0
        %764 = vmatpush.bf16.msra.mxu0 0
        %765 = vmatpush.bf16.msra.mxu0 0
        %766 = vmatpush.bf16.msra.mxu0 0
        %767 = vmatpush.bf16.msra.mxu0 %v684
        %768 = vmatpush.bf16.msra.mxu0 %v683
        %769 = vmatmul.bf16.gmra.mxu0 %v458
        %v770 = vpop.f32.mrf.mxu0
        %v771 = vadd.f32 %v742, %v770
        %v772 = vpop.f32.mrf.mxu0
        %v773 = vadd.f32 %v744, %v772
        %774 = vmatmul.bf16.gmra.mxu0 %v461
        %v775 = vpop.f32.mrf.mxu0
        %v776 = vadd.f32 %v747, %v775
        %v777 = vpop.f32.mrf.mxu0
        %v778 = vadd.f32 %v749, %v777
        %779 = vmatmul.bf16.gmra.mxu0 %v464
        %v780 = vpop.f32.mrf.mxu0
        %v781 = vadd.f32 %v752, %v780
        %v782 = vpop.f32.mrf.mxu0
        %v783 = vadd.f32 %v754, %v782
        %784 = vmatmul.bf16.gmra.mxu0 %v467
        %v785 = vpop.f32.mrf.mxu0
        %v786 = vadd.f32 %v757, %v785
        %v787 = vpop.f32.mrf.mxu0
        %v788 = vadd.f32 %v759, %v787
        %789 = vdwg.mxu0
        %v790 = vmax.f32 %v537, %v771
        %v791 = vmax.f32 %v539, %v773
        %v792 = vmax.f32 %v542, %v776
        %v793 = vmax.f32 %v544, %v778
        %v794 = vmax.f32 %v547, %v781
        %v795 = vmax.f32 %v549, %v783
        %v796 = vmax.f32 %v552, %v786
        %v797 = vmax.f32 %v554, %v788
        %s798 = sadd.s32 %s248, 576
        %s799 = smul.addr %s798, 4
        %s800 = scalar_lea.vmem %s218, %s799
        %v801 = vld [vmem:[%s800] sm:$0xf]
        %v802 = vld [vmem:[%s800 + $0x20] sm:$0xf]
        %v803 = vld [vmem:[%s800 + $0x40] sm:$0xf]
        %v804 = vld [vmem:[%s800 + $0x60] sm:$0xf]
        %v805 = vld [vmem:[%s800 + $0x80] sm:$0xf]
        %v806 = vld [vmem:[%s800 + $0xa0] sm:$0xf]
        %v807 = vld [vmem:[%s800 + $0xc0] sm:$0xf]
        %v808 = vld [vmem:[%s800 + $0xe0] sm:$0xf]
        %v809 = vld [vmem:[%s800 + $0x100] sm:$0xf]
        %v810 = vld [vmem:[%s800 + $0x120] sm:$0xf]
        %v811 = vld [vmem:[%s800 + $0x140] sm:$0xf]
        %v812 = vld [vmem:[%s800 + $0x160] sm:$0xf]
        %v813 = vld [vmem:[%s800 + $0x180] sm:$0xf]
        %v814 = vld [vmem:[%s800 + $0x1a0] sm:$0xf]
        %v815 = vld [vmem:[%s800 + $0x1c0] sm:$0xf]
        %v816 = vld [vmem:[%s800 + $0x1e0] sm:$0xf]
        %v817 = vld [vmem:[%s800 + $0x200] sm:$0xf]
        %v818 = vld [vmem:[%s800 + $0x220] sm:$0xf]
        %v819 = vld [vmem:[%s800 + $0x240] sm:$0xf]
        %v820 = vld [vmem:[%s800 + $0x260] sm:$0xf]
        %v821 = vld [vmem:[%s800 + $0x280] sm:$0xf]
        %v822 = vld [vmem:[%s800 + $0x2a0] sm:$0xf]
        %v823 = vld [vmem:[%s800 + $0x2c0] sm:$0xf]
        %v824 = vld [vmem:[%s800 + $0x2e0] sm:$0xf]
        %v825 = vld [vmem:[%s800 + $0x300] sm:$0xf]
        %v826 = vld [vmem:[%s800 + $0x320] sm:$0xf]
        %v827 = vld [vmem:[%s800 + $0x340] sm:$0xf]
        %v828 = vld [vmem:[%s800 + $0x360] sm:$0xf]
        %v829 = vld [vmem:[%s800 + $0x380] sm:$0xf]
        %v830 = vld [vmem:[%s800 + $0x3a0] sm:$0xf]
        %v831 = vld [vmem:[%s800 + $0x3c0] sm:$0xf]
        %v832 = vld [vmem:[%s800 + $0x3e0] sm:$0xf]
        %v833 = vld [vmem:[%s800 + $0x400] sm:$0xf]
        %v834 = vld [vmem:[%s800 + $0x420] sm:$0xf]
        %v835 = vld [vmem:[%s800 + $0x440] sm:$0xf]
        %v836 = vld [vmem:[%s800 + $0x460] sm:$0xf]
        %v873 = vunpack.c.l.b16 %v801
        %v874 = vunpack.c.l.b16 %v802
        %v875 = vunpack.c.l.b16 %v803
        %v876 = vunpack.c.l.b16 %v804
        %v877 = vunpack.c.l.b16 %v805
        %v878 = vunpack.c.l.b16 %v806
        %v879 = vunpack.c.l.b16 %v807
        %v880 = vunpack.c.l.b16 %v808
        %v881 = vunpack.c.l.b16 %v809
        %v882 = vunpack.c.l.b16 %v810
        %v883 = vunpack.c.l.b16 %v811
        %v884 = vunpack.c.l.b16 %v812
        %v885 = vunpack.c.l.b16 %v813
        %v886 = vunpack.c.l.b16 %v814
        %v887 = vunpack.c.l.b16 %v815
        %v888 = vunpack.c.l.b16 %v816
        %v889 = vunpack.c.l.b16 %v817
        %v890 = vunpack.c.l.b16 %v818
        %v891 = vunpack.c.l.b16 %v819
        %v892 = vunpack.c.l.b16 %v820
        %v893 = vunpack.c.l.b16 %v821
        %v894 = vunpack.c.l.b16 %v822
        %v895 = vunpack.c.l.b16 %v823
        %v896 = vunpack.c.l.b16 %v824
        %v897 = vunpack.c.l.b16 %v825
        %v898 = vunpack.c.l.b16 %v826
        %v899 = vunpack.c.l.b16 %v827
        %v900 = vunpack.c.l.b16 %v828
        %v901 = vunpack.c.l.b16 %v829
        %v902 = vunpack.c.l.b16 %v830
        %v903 = vunpack.c.l.b16 %v831
        %v904 = vunpack.c.l.b16 %v832
        %v905 = vunpack.c.l.b16 %v833
        %v906 = vunpack.c.l.b16 %v834
        %v907 = vunpack.c.l.b16 %v835
        %v908 = vunpack.c.l.b16 %v836
        %v909 = vpack.c.b16 %v874, %v873
        %v910 = vpack.c.b16 %v876, %v875
        %v911 = vpack.c.b16 %v878, %v877
        %v912 = vpack.c.b16 %v880, %v879
        %v913 = vpack.c.b16 %v882, %v881
        %v914 = vpack.c.b16 %v884, %v883
        %v915 = vpack.c.b16 %v886, %v885
        %v916 = vpack.c.b16 %v888, %v887
        %v917 = vpack.c.b16 %v890, %v889
        %v918 = vpack.c.b16 %v892, %v891
        %v919 = vpack.c.b16 %v894, %v893
        %v920 = vpack.c.b16 %v896, %v895
        %v921 = vpack.c.b16 %v898, %v897
        %v922 = vpack.c.b16 %v900, %v899
        %v923 = vpack.c.b16 %v902, %v901
        %v924 = vpack.c.b16 %v904, %v903
        %v925 = vpack.c.b16 %v906, %v905
        %v926 = vpack.c.b16 %v908, %v907
        %945 = vmatpush.bf16.msra.mxu0 %v916
        %946 = vmatpush.bf16.msra.mxu0 %v915
        %947 = vmatpush.bf16.msra.mxu0 %v914
        %948 = vmatpush.bf16.msra.mxu0 %v913
        %949 = vmatpush.bf16.msra.mxu0 %v912
        %950 = vmatpush.bf16.msra.mxu0 %v911
        %951 = vmatpush.bf16.msra.mxu0 %v910
        %952 = vmatpush.bf16.msra.mxu0 %v909
        %953 = vmatmul.bf16.gmra.mxu0 %v328
        %v954 = vpop.f32.mrf.mxu0
        %v955 = vadd.f32 0.0, %v954
        %v956 = vpop.f32.mrf.mxu0
        %v957 = vadd.f32 0.0, %v956
        %958 = vmatmul.bf16.gmra.mxu0 %v331
        %v959 = vpop.f32.mrf.mxu0
        %v960 = vadd.f32 0.0, %v959
        %v961 = vpop.f32.mrf.mxu0
        %v962 = vadd.f32 0.0, %v961
        %963 = vmatmul.bf16.gmra.mxu0 %v334
        %v964 = vpop.f32.mrf.mxu0
        %v965 = vadd.f32 0.0, %v964
        %v966 = vpop.f32.mrf.mxu0
        %v967 = vadd.f32 0.0, %v966
        %968 = vmatmul.bf16.gmra.mxu0 %v337
        %v969 = vpop.f32.mrf.mxu0
        %v970 = vadd.f32 0.0, %v969
        %v971 = vpop.f32.mrf.mxu0
        %v972 = vadd.f32 0.0, %v971
        %973 = vdwg.mxu0
        %974 = vmatpush.bf16.msra.mxu0 %v924
        %975 = vmatpush.bf16.msra.mxu0 %v923
        %976 = vmatpush.bf16.msra.mxu0 %v922
        %977 = vmatpush.bf16.msra.mxu0 %v921
        %978 = vmatpush.bf16.msra.mxu0 %v920
        %979 = vmatpush.bf16.msra.mxu0 %v919
        %980 = vmatpush.bf16.msra.mxu0 %v918
        %981 = vmatpush.bf16.msra.mxu0 %v917
        %982 = vmatmul.bf16.gmra.mxu0 %v329
        %v983 = vpop.f32.mrf.mxu0
        %v984 = vadd.f32 %v955, %v983
        %v985 = vpop.f32.mrf.mxu0
        %v986 = vadd.f32 %v957, %v985
        %987 = vmatmul.bf16.gmra.mxu0 %v332
        %v988 = vpop.f32.mrf.mxu0
        %v989 = vadd.f32 %v960, %v988
        %v990 = vpop.f32.mrf.mxu0
        %v991 = vadd.f32 %v962, %v990
        %992 = vmatmul.bf16.gmra.mxu0 %v335
        %v993 = vpop.f32.mrf.mxu0
        %v994 = vadd.f32 %v965, %v993
        %v995 = vpop.f32.mrf.mxu0
        %v996 = vadd.f32 %v967, %v995
        %997 = vmatmul.bf16.gmra.mxu0 %v338
        %v998 = vpop.f32.mrf.mxu0
        %v999 = vadd.f32 %v970, %v998
        %v1000 = vpop.f32.mrf.mxu0
        %v1001 = vadd.f32 %v972, %v1000
        %1002 = vdwg.mxu0
        %1003 = vmatpush.bf16.msra.mxu0 0
        %1004 = vmatpush.bf16.msra.mxu0 0
        %1005 = vmatpush.bf16.msra.mxu0 0
        %1006 = vmatpush.bf16.msra.mxu0 0
        %1007 = vmatpush.bf16.msra.mxu0 0
        %1008 = vmatpush.bf16.msra.mxu0 0
        %1009 = vmatpush.bf16.msra.mxu0 %v926
        %1010 = vmatpush.bf16.msra.mxu0 %v925
        %1011 = vmatmul.bf16.gmra.mxu0 %v458
        %v1012 = vpop.f32.mrf.mxu0
        %v1013 = vadd.f32 %v984, %v1012
        %v1014 = vpop.f32.mrf.mxu0
        %v1015 = vadd.f32 %v986, %v1014
        %1016 = vmatmul.bf16.gmra.mxu0 %v461
        %v1017 = vpop.f32.mrf.mxu0
        %v1018 = vadd.f32 %v989, %v1017
        %v1019 = vpop.f32.mrf.mxu0
        %v1020 = vadd.f32 %v991, %v1019
        %1021 = vmatmul.bf16.gmra.mxu0 %v464
        %v1022 = vpop.f32.mrf.mxu0
        %v1023 = vadd.f32 %v994, %v1022
        %v1024 = vpop.f32.mrf.mxu0
        %v1025 = vadd.f32 %v996, %v1024
        %1026 = vmatmul.bf16.gmra.mxu0 %v467
        %v1027 = vpop.f32.mrf.mxu0
        %v1028 = vadd.f32 %v999, %v1027
        %v1029 = vpop.f32.mrf.mxu0
        %v1030 = vadd.f32 %v1001, %v1029
        %1031 = vdwg.mxu0
        %v1032 = vmax.f32 %v790, %v1013
        %v1033 = vmax.f32 %v791, %v1015
        %v1034 = vmax.f32 %v792, %v1018
        %v1035 = vmax.f32 %v793, %v1020
        %v1036 = vmax.f32 %v794, %v1023
        %v1037 = vmax.f32 %v795, %v1025
        %v1038 = vmax.f32 %v796, %v1028
        %v1039 = vmax.f32 %v797, %v1030
        %s1040 = sadd.s32 %s248, 864
        %s1041 = smul.addr %s1040, 4
        %s1042 = scalar_lea.vmem %s218, %s1041
        %v1043 = vld [vmem:[%s1042] sm:$0xf]
        %v1044 = vld [vmem:[%s1042 + $0x20] sm:$0xf]
        %v1045 = vld [vmem:[%s1042 + $0x40] sm:$0xf]
        %v1046 = vld [vmem:[%s1042 + $0x60] sm:$0xf]
        %v1047 = vld [vmem:[%s1042 + $0x80] sm:$0xf]
        %v1048 = vld [vmem:[%s1042 + $0xa0] sm:$0xf]
        %v1049 = vld [vmem:[%s1042 + $0xc0] sm:$0xf]
        %v1050 = vld [vmem:[%s1042 + $0xe0] sm:$0xf]
        %v1051 = vld [vmem:[%s1042 + $0x100] sm:$0xf]
        %v1052 = vld [vmem:[%s1042 + $0x120] sm:$0xf]
        %v1053 = vld [vmem:[%s1042 + $0x140] sm:$0xf]
        %v1054 = vld [vmem:[%s1042 + $0x160] sm:$0xf]
        %v1055 = vld [vmem:[%s1042 + $0x180] sm:$0xf]
        %v1056 = vld [vmem:[%s1042 + $0x1a0] sm:$0xf]
        %v1057 = vld [vmem:[%s1042 + $0x1c0] sm:$0xf]
        %v1058 = vld [vmem:[%s1042 + $0x1e0] sm:$0xf]
        %v1059 = vld [vmem:[%s1042 + $0x200] sm:$0xf]
        %v1060 = vld [vmem:[%s1042 + $0x220] sm:$0xf]
        %v1061 = vld [vmem:[%s1042 + $0x240] sm:$0xf]
        %v1062 = vld [vmem:[%s1042 + $0x260] sm:$0xf]
        %v1063 = vld [vmem:[%s1042 + $0x280] sm:$0xf]
        %v1064 = vld [vmem:[%s1042 + $0x2a0] sm:$0xf]
        %v1065 = vld [vmem:[%s1042 + $0x2c0] sm:$0xf]
        %v1066 = vld [vmem:[%s1042 + $0x2e0] sm:$0xf]
        %v1067 = vld [vmem:[%s1042 + $0x300] sm:$0xf]
        %v1068 = vld [vmem:[%s1042 + $0x320] sm:$0xf]
        %v1069 = vld [vmem:[%s1042 + $0x340] sm:$0xf]
        %v1070 = vld [vmem:[%s1042 + $0x360] sm:$0xf]
        %v1071 = vld [vmem:[%s1042 + $0x380] sm:$0xf]
        %v1072 = vld [vmem:[%s1042 + $0x3a0] sm:$0xf]
        %v1073 = vld [vmem:[%s1042 + $0x3c0] sm:$0xf]
        %v1074 = vld [vmem:[%s1042 + $0x3e0] sm:$0xf]
        %v1075 = vld [vmem:[%s1042 + $0x400] sm:$0xf]
        %v1076 = vld [vmem:[%s1042 + $0x420] sm:$0xf]
        %v1077 = vld [vmem:[%s1042 + $0x440] sm:$0xf]
        %v1078 = vld [vmem:[%s1042 + $0x460] sm:$0xf]
        %v1115 = vunpack.c.l.b16 %v1043
        %v1116 = vunpack.c.l.b16 %v1044
        %v1117 = vunpack.c.l.b16 %v1045
        %v1118 = vunpack.c.l.b16 %v1046
        %v1119 = vunpack.c.l.b16 %v1047
        %v1120 = vunpack.c.l.b16 %v1048
        %v1121 = vunpack.c.l.b16 %v1049
        %v1122 = vunpack.c.l.b16 %v1050
        %v1123 = vunpack.c.l.b16 %v1051
        %v1124 = vunpack.c.l.b16 %v1052
        %v1125 = vunpack.c.l.b16 %v1053
        %v1126 = vunpack.c.l.b16 %v1054
        %v1127 = vunpack.c.l.b16 %v1055
        %v1128 = vunpack.c.l.b16 %v1056
        %v1129 = vunpack.c.l.b16 %v1057
        %v1130 = vunpack.c.l.b16 %v1058
        %v1131 = vunpack.c.l.b16 %v1059
        %v1132 = vunpack.c.l.b16 %v1060
        %v1133 = vunpack.c.l.b16 %v1061
        %v1134 = vunpack.c.l.b16 %v1062
        %v1135 = vunpack.c.l.b16 %v1063
        %v1136 = vunpack.c.l.b16 %v1064
        %v1137 = vunpack.c.l.b16 %v1065
        %v1138 = vunpack.c.l.b16 %v1066
        %v1139 = vunpack.c.l.b16 %v1067
        %v1140 = vunpack.c.l.b16 %v1068
        %v1141 = vunpack.c.l.b16 %v1069
        %v1142 = vunpack.c.l.b16 %v1070
        %v1143 = vunpack.c.l.b16 %v1071
        %v1144 = vunpack.c.l.b16 %v1072
        %v1145 = vunpack.c.l.b16 %v1073
        %v1146 = vunpack.c.l.b16 %v1074
        %v1147 = vunpack.c.l.b16 %v1075
        %v1148 = vunpack.c.l.b16 %v1076
        %v1149 = vunpack.c.l.b16 %v1077
        %v1150 = vunpack.c.l.b16 %v1078
        %v1151 = vpack.c.b16 %v1116, %v1115
        %v1152 = vpack.c.b16 %v1118, %v1117
        %v1153 = vpack.c.b16 %v1120, %v1119
        %v1154 = vpack.c.b16 %v1122, %v1121
        %v1155 = vpack.c.b16 %v1124, %v1123
        %v1156 = vpack.c.b16 %v1126, %v1125
        %v1157 = vpack.c.b16 %v1128, %v1127
        %v1158 = vpack.c.b16 %v1130, %v1129
        %v1159 = vpack.c.b16 %v1132, %v1131
        %v1160 = vpack.c.b16 %v1134, %v1133
        %v1161 = vpack.c.b16 %v1136, %v1135
        %v1162 = vpack.c.b16 %v1138, %v1137
        %v1163 = vpack.c.b16 %v1140, %v1139
        %v1164 = vpack.c.b16 %v1142, %v1141
        %v1165 = vpack.c.b16 %v1144, %v1143
        %v1166 = vpack.c.b16 %v1146, %v1145
        %v1167 = vpack.c.b16 %v1148, %v1147
        %v1168 = vpack.c.b16 %v1150, %v1149
        %1187 = vmatpush.bf16.msra.mxu0 %v1158
        %1188 = vmatpush.bf16.msra.mxu0 %v1157
        %1189 = vmatpush.bf16.msra.mxu0 %v1156
        %1190 = vmatpush.bf16.msra.mxu0 %v1155
        %1191 = vmatpush.bf16.msra.mxu0 %v1154
        %1192 = vmatpush.bf16.msra.mxu0 %v1153
        %1193 = vmatpush.bf16.msra.mxu0 %v1152
        %1194 = vmatpush.bf16.msra.mxu0 %v1151
        %1195 = vmatmul.bf16.gmra.mxu0 %v328
        %v1196 = vpop.f32.mrf.mxu0
        %v1197 = vadd.f32 0.0, %v1196
        %v1198 = vpop.f32.mrf.mxu0
        %v1199 = vadd.f32 0.0, %v1198
        %1200 = vmatmul.bf16.gmra.mxu0 %v331
        %v1201 = vpop.f32.mrf.mxu0
        %v1202 = vadd.f32 0.0, %v1201
        %v1203 = vpop.f32.mrf.mxu0
        %v1204 = vadd.f32 0.0, %v1203
        %1205 = vmatmul.bf16.gmra.mxu0 %v334
        %v1206 = vpop.f32.mrf.mxu0
        %v1207 = vadd.f32 0.0, %v1206
        %v1208 = vpop.f32.mrf.mxu0
        %v1209 = vadd.f32 0.0, %v1208
        %1210 = vmatmul.bf16.gmra.mxu0 %v337
        %v1211 = vpop.f32.mrf.mxu0
        %v1212 = vadd.f32 0.0, %v1211
        %v1213 = vpop.f32.mrf.mxu0
        %v1214 = vadd.f32 0.0, %v1213
        %1215 = vdwg.mxu0
        %1216 = vmatpush.bf16.msra.mxu0 %v1166
        %1217 = vmatpush.bf16.msra.mxu0 %v1165
        %1218 = vmatpush.bf16.msra.mxu0 %v1164
        %1219 = vmatpush.bf16.msra.mxu0 %v1163
        %1220 = vmatpush.bf16.msra.mxu0 %v1162
        %1221 = vmatpush.bf16.msra.mxu0 %v1161
        %1222 = vmatpush.bf16.msra.mxu0 %v1160
        %1223 = vmatpush.bf16.msra.mxu0 %v1159
        %1224 = vmatmul.bf16.gmra.mxu0 %v329
        %v1225 = vpop.f32.mrf.mxu0
        %v1226 = vadd.f32 %v1197, %v1225
        %v1227 = vpop.f32.mrf.mxu0
        %v1228 = vadd.f32 %v1199, %v1227
        %1229 = vmatmul.bf16.gmra.mxu0 %v332
        %v1230 = vpop.f32.mrf.mxu0
        %v1231 = vadd.f32 %v1202, %v1230
        %v1232 = vpop.f32.mrf.mxu0
        %v1233 = vadd.f32 %v1204, %v1232
        %1234 = vmatmul.bf16.gmra.mxu0 %v335
        %v1235 = vpop.f32.mrf.mxu0
        %v1236 = vadd.f32 %v1207, %v1235
        %v1237 = vpop.f32.mrf.mxu0
        %v1238 = vadd.f32 %v1209, %v1237
        %1239 = vmatmul.bf16.gmra.mxu0 %v338
        %v1240 = vpop.f32.mrf.mxu0
        %v1241 = vadd.f32 %v1212, %v1240
        %v1242 = vpop.f32.mrf.mxu0
        %v1243 = vadd.f32 %v1214, %v1242
        %1244 = vdwg.mxu0
        %1245 = vmatpush.bf16.msra.mxu0 0
        %1246 = vmatpush.bf16.msra.mxu0 0
        %1247 = vmatpush.bf16.msra.mxu0 0
        %1248 = vmatpush.bf16.msra.mxu0 0
        %1249 = vmatpush.bf16.msra.mxu0 0
        %1250 = vmatpush.bf16.msra.mxu0 0
        %1251 = vmatpush.bf16.msra.mxu0 %v1168
        %1252 = vmatpush.bf16.msra.mxu0 %v1167
        %1253 = vmatmul.bf16.gmra.mxu0 %v458
        %v1254 = vpop.f32.mrf.mxu0
        %v1255 = vadd.f32 %v1226, %v1254
        %v1256 = vpop.f32.mrf.mxu0
        %v1257 = vadd.f32 %v1228, %v1256
        %1258 = vmatmul.bf16.gmra.mxu0 %v461
        %v1259 = vpop.f32.mrf.mxu0
        %v1260 = vadd.f32 %v1231, %v1259
        %v1261 = vpop.f32.mrf.mxu0
        %v1262 = vadd.f32 %v1233, %v1261
        %1263 = vmatmul.bf16.gmra.mxu0 %v464
        %v1264 = vpop.f32.mrf.mxu0
        %v1265 = vadd.f32 %v1236, %v1264
        %v1266 = vpop.f32.mrf.mxu0
        %v1267 = vadd.f32 %v1238, %v1266
        %1268 = vmatmul.bf16.gmra.mxu0 %v467
        %v1269 = vpop.f32.mrf.mxu0
        %v1270 = vadd.f32 %v1241, %v1269
        %v1271 = vpop.f32.mrf.mxu0
        %v1272 = vadd.f32 %v1243, %v1271
        %1273 = vdwg.mxu0
        %v1274 = vmax.f32 %v1032, %v1255
        %v1275 = vmax.f32 %v1033, %v1257
        %v1276 = vmax.f32 %v1034, %v1260
        %v1277 = vmax.f32 %v1035, %v1262
        %v1278 = vmax.f32 %v1036, %v1265
        %v1279 = vmax.f32 %v1037, %v1267
        %v1280 = vmax.f32 %v1038, %v1270
        %v1281 = vmax.f32 %v1039, %v1272
        %v1282 = vld [vmem:[%s2] sm:$0xff]
        %v1283 = vld [vmem:[%s2 + $0x8] sm:$0xff]
        %v1284 = vld [vmem:[%s2 + $0x10] sm:$0xff]
        %v1285 = vld [vmem:[%s2 + $0x18] sm:$0xff]
        %v1286 = vld [vmem:[%s2 + $0x20] sm:$0xff]
        %v1287 = vld [vmem:[%s2 + $0x28] sm:$0xff]
        %v1288 = vld [vmem:[%s2 + $0x30] sm:$0xff]
        %v1289 = vld [vmem:[%s2 + $0x38] sm:$0xff]
        %1291 = vset.pattern.permute.xlu0 0
        %1292 = vperm.xlu0 %1291, %v1282
        %v1293 = vpop.permute.xlu0 %1292
        %1296 = vset.pattern.permute.xlu0 0
        %1297 = vperm.xlu0 %1296, %v1283
        %v1298 = vpop.permute.xlu0 %1297
        %1301 = vset.pattern.permute.xlu0 0
        %1302 = vperm.xlu0 %1301, %v1284
        %v1303 = vpop.permute.xlu0 %1302
        %1306 = vset.pattern.permute.xlu0 0
        %1307 = vperm.xlu0 %1306, %v1285
        %v1308 = vpop.permute.xlu0 %1307
        %1311 = vset.pattern.permute.xlu0 0
        %1312 = vperm.xlu0 %1311, %v1286
        %v1313 = vpop.permute.xlu0 %1312
        %1316 = vset.pattern.permute.xlu0 0
        %1317 = vperm.xlu0 %1316, %v1287
        %v1318 = vpop.permute.xlu0 %1317
        %1321 = vset.pattern.permute.xlu0 0
        %1322 = vperm.xlu0 %1321, %v1288
        %v1323 = vpop.permute.xlu0 %1322
        %1326 = vset.pattern.permute.xlu0 0
        %1327 = vperm.xlu0 %1326, %v1289
        %v1328 = vpop.permute.xlu0 %1327
        %v1330 = vadd.f32 %v1274, %v1293
        %v1331 = vadd.f32 %v1275, %v1298
        %v1332 = vadd.f32 %v1276, %v1303
        %v1333 = vadd.f32 %v1277, %v1308
        %v1334 = vadd.f32 %v1278, %v1313
        %v1335 = vadd.f32 %v1279, %v1318
        %v1336 = vadd.f32 %v1280, %v1323
        %v1337 = vadd.f32 %v1281, %v1328
        %v1338 = vmax.f32 %v1330, 0.0
        %v1339 = vmax.f32 %v1331, 0.0
        %v1340 = vmax.f32 %v1332, 0.0
        %v1341 = vmax.f32 %v1333, 0.0
        %v1342 = vmax.f32 %v1334, 0.0
        %v1343 = vmax.f32 %v1335, 0.0
        %v1344 = vmax.f32 %v1336, 0.0
        %v1345 = vmax.f32 %v1337, 0.0
        %s1346 = smul.addr %s248, 8
        %s1347 = scalar_lea.vmem %s3, %s1346
        %v1348 = vld [vmem:[%s1347] sm:$0xff]
        %v1349 = vld [vmem:[%s1347 + $0x40] sm:$0xff]
        %v1350 = vld [vmem:[%s1347 + $0x80] sm:$0xff]
        %v1351 = vld [vmem:[%s1347 + $0xc0] sm:$0xff]
        %v1352 = vld [vmem:[%s1347 + $0x100] sm:$0xff]
        %v1353 = vld [vmem:[%s1347 + $0x140] sm:$0xff]
        %v1354 = vld [vmem:[%s1347 + $0x180] sm:$0xff]
        %v1355 = vld [vmem:[%s1347 + $0x1c0] sm:$0xff]
        %v1356 = vmul.f32 %v1338, %v1348
        %v1357 = vmul.f32 %v1339, %v1349
        %v1358 = vmul.f32 %v1340, %v1350
        %v1359 = vmul.f32 %v1341, %v1351
        %v1360 = vmul.f32 %v1342, %v1352
        %v1361 = vmul.f32 %v1343, %v1353
        %v1362 = vmul.f32 %v1344, %v1354
        %v1363 = vmul.f32 %v1345, %v1355
        %v1364 = vadd.f32 %v1356, %v1357
        %v1365 = vadd.f32 %v1364, %v1358
        %v1366 = vadd.f32 %v1365, %v1359
        %v1367 = vadd.f32 %v1366, %v1360
        %v1368 = vadd.f32 %v1367, %v1361
        %v1369 = vadd.f32 %v1368, %v1362
        %v1370 = vadd.f32 %v1369, %v1363
        %v1371 = vrot.slane %v1370, 4
        %v1372 = vadd.f32 %v1370, %v1371
        %v1373 = vrot.slane %v1372, 2
        %v1374 = vadd.f32 %v1372, %v1373
        %v1375 = vrot.slane %v1374, 1
        %v1376 = vadd.f32 %v1374, %v1375
        %s1377 = sadd.s32 %s248, 64
        %s1378 = smul.addr %s1377, 8
        %s1379 = scalar_lea.vmem %s3, %s1378
        %v1380 = vld [vmem:[%s1379] sm:$0xff]
        %v1381 = vld [vmem:[%s1379 + $0x40] sm:$0xff]
        %v1382 = vld [vmem:[%s1379 + $0x80] sm:$0xff]
        %v1383 = vld [vmem:[%s1379 + $0xc0] sm:$0xff]
        %v1384 = vld [vmem:[%s1379 + $0x100] sm:$0xff]
        %v1385 = vld [vmem:[%s1379 + $0x140] sm:$0xff]
        %v1386 = vld [vmem:[%s1379 + $0x180] sm:$0xff]
        %v1387 = vld [vmem:[%s1379 + $0x1c0] sm:$0xff]
        %v1388 = vmul.f32 %v1338, %v1380
        %v1389 = vmul.f32 %v1339, %v1381
        %v1390 = vmul.f32 %v1340, %v1382
        %v1391 = vmul.f32 %v1341, %v1383
        %v1392 = vmul.f32 %v1342, %v1384
        %v1393 = vmul.f32 %v1343, %v1385
        %v1394 = vmul.f32 %v1344, %v1386
        %v1395 = vmul.f32 %v1345, %v1387
        %v1396 = vadd.f32 %v1388, %v1389
        %v1397 = vadd.f32 %v1396, %v1390
        %v1398 = vadd.f32 %v1397, %v1391
        %v1399 = vadd.f32 %v1398, %v1392
        %v1400 = vadd.f32 %v1399, %v1393
        %v1401 = vadd.f32 %v1400, %v1394
        %v1402 = vadd.f32 %v1401, %v1395
        %v1403 = vrot.slane %v1402, 4
        %v1404 = vadd.f32 %v1402, %v1403
        %v1405 = vrot.slane %v1404, 2
        %v1406 = vadd.f32 %v1404, %v1405
        %v1407 = vrot.slane %v1406, 1
        %v1408 = vadd.f32 %v1406, %v1407
        %s1409 = sadd.s32 %s248, 128
        %s1410 = smul.addr %s1409, 8
        %s1411 = scalar_lea.vmem %s3, %s1410
        %v1412 = vld [vmem:[%s1411] sm:$0xff]
        %v1413 = vld [vmem:[%s1411 + $0x40] sm:$0xff]
        %v1414 = vld [vmem:[%s1411 + $0x80] sm:$0xff]
        %v1415 = vld [vmem:[%s1411 + $0xc0] sm:$0xff]
        %v1416 = vld [vmem:[%s1411 + $0x100] sm:$0xff]
        %v1417 = vld [vmem:[%s1411 + $0x140] sm:$0xff]
        %v1418 = vld [vmem:[%s1411 + $0x180] sm:$0xff]
        %v1419 = vld [vmem:[%s1411 + $0x1c0] sm:$0xff]
        %v1420 = vmul.f32 %v1338, %v1412
        %v1421 = vmul.f32 %v1339, %v1413
        %v1422 = vmul.f32 %v1340, %v1414
        %v1423 = vmul.f32 %v1341, %v1415
        %v1424 = vmul.f32 %v1342, %v1416
        %v1425 = vmul.f32 %v1343, %v1417
        %v1426 = vmul.f32 %v1344, %v1418
        %v1427 = vmul.f32 %v1345, %v1419
        %v1428 = vadd.f32 %v1420, %v1421
        %v1429 = vadd.f32 %v1428, %v1422
        %v1430 = vadd.f32 %v1429, %v1423
        %v1431 = vadd.f32 %v1430, %v1424
        %v1432 = vadd.f32 %v1431, %v1425
        %v1433 = vadd.f32 %v1432, %v1426
        %v1434 = vadd.f32 %v1433, %v1427
        %v1435 = vrot.slane %v1434, 4
        %v1436 = vadd.f32 %v1434, %v1435
        %v1437 = vrot.slane %v1436, 2
        %v1438 = vadd.f32 %v1436, %v1437
        %v1439 = vrot.slane %v1438, 1
        %v1440 = vadd.f32 %v1438, %v1439
        %vm1441 = vcmask 1040384
        %v1442 = vsel %vm1441, %v1376, %v1408
        %vm1443 = vcmask 1041408
        %v1444 = vsel %vm1443, %v1442, %v1440
        %v1445 = vadd.f32 %v230, %v1444
      $region45: #{cnn_forward.3} parent=39 // loop_footer
        %s229 = sadd.s32 1, %s225
      $region46: #{cnn_forward.3} parent=39 // loop_footer_branch
        %224 = sbr.rel target = $region42
      $region47: #{cnn_forward.3} parent=39 // loop_exit
        _
      %vm1446 = vcmask 1042432
      %v1447 = vsel %vm1446, %v230, 0.0
      %1448 = vadd.xlane.f32.xlu0 %v1447
      %v1449 = vpop.xlane.xlu0 %1448
      %v1450 = vld [vmem:[%s4] sm:$0x7]
      %v1451 = vadd.f32 %v1449, %v1450
      %vm1452 = vcmask 2048
      %1453 = vst.msk [vmem:[%s222] sm:$0x7] %vm1452, %v1451
      %p1454 = scmp.lt.s32.totalorder %s16, 1
      %s1455 = scalar_select %p1454, %s16, 1
      %s1456 = smul.addr %s1455, 4
      %s1457 = scalar_lea.vmem %s5, %s1456
      // Predicated region
      $region48: #{cnn_forward.3} parent=39 // pred_check
        %p1458 = pneg %p144
      $region49: #{cnn_forward.3} parent=39 // pred_check_branch
        %1460 = sbr.rel (%p1458) target = $region51
      $region50: #{cnn_forward.3} parent=39 // pred_region
        _
      $region51: #{cnn_forward.3} parent=39 // pred_fallthru
        _
    $region40: #{cnn_forward.3} parent=5 // pred_fallthru
      _
    %p1461 = scmp.le.s32.totalorder 2, %s11
    // Predicated region
    $region52: #{cnn_forward.3} parent=5 // pred_check
      %p1462 = pneg %p1461
    $region53: #{cnn_forward.3} parent=5 // pred_check_branch
      %1464 = sbr.rel (%p1462) target = $region55
    $region54: #{cnn_forward.3} parent=5 // pred_region
      %s1465 = ssub.s32 %s11, 2
      // Predicated region
      $region56: #{cnn_forward.3} parent=54 // pred_check
        %p1466 = pneg %p150
      $region57: #{cnn_forward.3} parent=54 // pred_check_branch
        %1468 = sbr.rel (%p1466) target = $region59
      $region58: #{cnn_forward.3} parent=54 // pred_region
        %p1469 = scmp.lt.s32.totalorder %s17, 1
        %s1470 = scalar_select %p1469, %s17, 1
        %s1471 = smul.addr %s1470, 4
        %s1472 = scalar_lea.vmem %s5, %s1471
      $region59: #{cnn_forward.3} parent=54 // pred_fallthru
        _
    $region55: #{cnn_forward.3} parent=5 // pred_fallthru
      _
  $region6: #{cnn_forward.3} parent=0 // loop_footer
    %s15 = sadd.s32 1, %s11
  $region7: #{cnn_forward.3} parent=0 // loop_footer_branch
    %10 = sbr.rel target = $region3
  $region8: #{cnn_forward.3} parent=0 // loop_exit
    _

</llo_original>
